<compile_context>
chip_gen: v7x
topology: tpu7x:2x2x1
jax: 0.10.0
libtpu: 0.0.40
codegen_flags: <defaults>
</compile_context>

<pallas_src>
import functools

import jax
import jax.numpy as jnp
from jax import lax
from jax.experimental import pallas as pl
from jax.experimental.pallas import tpu as pltpu


def _round_up(x, m):
    return (x + m - 1) // m * m


# ---------------------------------------------------------------------------
# Per-cluster kernel
# ---------------------------------------------------------------------------
def _cluster_kernel(tmin_ref,     # SMEM (num_row_tiles,) int32  [scalar prefetch]
                    tmax_ref,     # SMEM (num_row_tiles,) int32  [scalar prefetch]
                    acc_ref,      # VMEM (TN, P_pad) f32  (aliased with the output)
                    ids_ref,      # VMEM (TN, 1) int32
                    emb_ref,      # VMEM (TV, D_pad) bf16
                    projT_ref,    # VMEM (D_pad, P_pad) bf16  (emb_scale folded in)
                    out_ref,      # VMEM (TN, P_pad) f32  (resident across v)
                    part_ref,     # VMEM scratch (TN, D_pad) f32
                    *, left, right):
    n = pl.program_id(0)          # token-row tile  (parallel; shards across TCs)
    v = pl.program_id(1)          # vocab tile      (arbitrary, innermost)
    n_vtiles = pl.num_programs(1)

    TN = ids_ref.shape[0]
    TV = emb_ref.shape[0]

    t_lo = tmin_ref[n]            # min / max token id in this row tile
    t_hi = tmax_ref[n]

    win_lo = left + v * TV
    win_hi = jnp.minimum(right, win_lo + TV)

    @pl.when(v == 0)
    def _init_partial():
        part_ref[...] = jnp.zeros_like(part_ref)

    # Gather: one_hot(ids) @ E_tile.  Skipped when no id of this row tile can
    # produce a nonzero contribution from this window (the emb index_map also
    # clamps the block index in that case, so the DMA is elided too).
    @pl.when((t_hi >= win_lo) & (t_lo < win_hi))
    def _gather():
        local = ids_ref[...] - win_lo                               # (TN, 1) int32
        vocab_iota = lax.broadcasted_iota(jnp.int32, (TN, TV), 1)
        # Out-of-window ids either miss the iota (local < 0 or >= TV) or select a
        # padded row that is exactly zero, so a single compare is sufficient.
        onehot = (local == vocab_iota).astype(jnp.bfloat16)         # (TN, TV)
        part_ref[...] += jnp.dot(onehot, emb_ref[...],
                                 preferred_element_type=jnp.float32)

    # Last vocab tile: project and accumulate into the (aliased) output block.
    last = v == n_vtiles - 1
    has_rows = (t_hi >= left) & (t_lo < right)

    @pl.when(last & has_rows)
    def _project():
        # part_ref holds at most one bf16 table row per token -> cast is lossless.
        out_ref[...] = acc_ref[...] + jnp.dot(
            part_ref[...].astype(jnp.bfloat16), projT_ref[...],
            preferred_element_type=jnp.float32)

    @pl.when(last & jnp.logical_not(has_rows))
    def _passthrough():
        out_ref[...] = acc_ref[...]


# ---------------------------------------------------------------------------
# One-time weight preprocessing (cacheable for static weights)
# ---------------------------------------------------------------------------
def prepare_adaptive_embedding_params(emb_tables, emb_projs, cutoff_ends, d_proj,
                                      *, tile_v=1024):
    """Per-cluster zero-padding to (V_pad_i, D_pad_i = round_up(d_emb_i, 128)),
    emb_scale folded into the projection, weights stored in bf16."""
    n_clusters = len(cutoff_ends) - 1
    emb_scale = float(d_proj) ** 0.5
    P_pad = _round_up(d_proj, 128)

    E_list, PT_list, TV_list = [], [], []
    for i in range(n_clusters):
        E = jnp.asarray(emb_tables[i], jnp.float32)
        P = jnp.asarray(emb_projs[i], jnp.float32)
        v, d = int(E.shape[0]), int(E.shape[1])
        TV = min(_round_up(tile_v, 128), _round_up(v, 128))
        V_pad = _round_up(v, TV)
        D_pad = _round_up(d, 128)

        E_pad = jnp.zeros((V_pad, D_pad), jnp.bfloat16).at[:v, :d].set(
            E.astype(jnp.bfloat16))
        PT_pad = jnp.zeros((D_pad, P_pad), jnp.bfloat16).at[:d, :d_proj].set(
            (emb_scale * P.T).astype(jnp.bfloat16))

        E_list.append(E_pad)
        PT_list.append(PT_pad)
        TV_list.append(int(TV))

    return dict(E_list=E_list, PT_list=PT_list, TV_list=TV_list,
                cutoff_ends=[int(c) for c in cutoff_ends],
                d_proj=int(d_proj), P_pad=int(P_pad))


# ---------------------------------------------------------------------------
# Launch wrapper
# ---------------------------------------------------------------------------
def _vmem_bytes_estimate(TN, TV, D_pad, P_pad):
    acc_in = 2 * TN * P_pad * 4           # double-buffered aliased input block
    out = 2 * TN * P_pad * 4
    ids = 2 * TN * 128 * 4                # (TN, 1) block is lane-padded in VMEM
    emb = 2 * TV * D_pad * 2
    proj = 2 * D_pad * P_pad * 2
    part = TN * D_pad * 4
    onehot = TN * TV * (4 + 2)            # iota + bf16 one-hot temporaries
    return acc_in + out + ids + emb + proj + part + onehot


def adaptive_embedding_pallas(ids, params, *, tile_n=1024):
    """ids: (B, S) int32 token ids; returns (B, S, d_proj) float32."""
    B, S = ids.shape
    N = B * S

    E_list = params["E_list"]
    PT_list = params["PT_list"]
    TV_list = params["TV_list"]
    cutoff_ends = params["cutoff_ends"]
    d_proj = params["d_proj"]
    P_pad = params["P_pad"]
    n_clusters = len(E_list)

    # --- VMEM budget (v7x: 64 MiB physical; v5e/v6e: 128 MiB) -------------------
    try:
        vmem_cap = int(pltpu.get_tpu_info().vmem_capacity_bytes)
    except Exception:
        vmem_cap = 64 * 1024 * 1024       # conservative (v7x) fallback
    budget = int(0.70 * vmem_cap)

    max_D = max(int(E.shape[1]) for E in E_list)
    max_TV = max(TV_list)

    TN = min(_round_up(tile_n, 8), _round_up(N, 8))
    while TN > 256 and _vmem_bytes_estimate(TN, max_TV, max_D, P_pad) > budget:
        TN = _round_up(TN // 2, 8)
    # Prefer >=2 row tiles so the 'parallel' axis can shard across v7x's two TCs.
    if N > 8 and _round_up(N, TN) // TN < 2:
        TN = max(8, _round_up((N + 1) // 2, 8))

    N_pad = _round_up(N, TN)
    num_n_tiles = N_pad // TN

    vmem_limit = int(min(max(2 * _vmem_bytes_estimate(TN, max_TV, max_D, P_pad),
                             32 * 1024 * 1024),
                         int(0.92 * vmem_cap)))

    ids_flat = ids.reshape(-1).astype(jnp.int32)
    ids_pad = jnp.pad(ids_flat, (0, N_pad - N), constant_values=-1)  # -1 never matches
    valid = jnp.arange(N_pad) < N
    big = jnp.int32(2 ** 30)
    tile_min = jnp.where(valid, ids_pad, big).reshape(num_n_tiles, TN).min(axis=1)
    tile_max = jnp.where(valid, ids_pad, -big).reshape(num_n_tiles, TN).max(axis=1)
    ids_col = ids_pad.reshape(N_pad, 1)

    def _cluster_call(acc, ids_col, tmin, tmax, E_pad, PT_pad, left, right, TV):
        V_pad, D_pad = int(E_pad.shape[0]), int(E_pad.shape[1])
        num_v_tiles = V_pad // TV
        v_cap = V_pad - 1

        def emb_index_map(n, v, tmin_ref, tmax_ref):
            # Clamp the vocab-tile index to the id range of this row tile so
            # Pallas elides the DMA for tiles the kernel will skip.
            lo = lax.div(jnp.clip(tmin_ref[n] - left, 0, v_cap), jnp.int32(TV))
            hi = lax.div(jnp.clip(tmax_ref[n] - left, 0, v_cap), jnp.int32(TV))
            vlo = jnp.minimum(lo, hi)
            vhi = jnp.maximum(lo, hi)
            return (jnp.clip(v, vlo, vhi), 0)

        kernel = functools.partial(_cluster_kernel, left=left, right=right)

        return pl.pallas_call(
            kernel,
            out_shape=jax.ShapeDtypeStruct((N_pad, P_pad), jnp.float32),
            grid_spec=pltpu.PrefetchScalarGridSpec(
                num_scalar_prefetch=2,
                grid=(num_n_tiles, num_v_tiles),
                in_specs=[
                    pl.BlockSpec((TN, P_pad), lambda n, v, *_: (n, 0)),    # acc (aliased)
                    pl.BlockSpec((TN, 1), lambda n, v, *_: (n, 0)),        # ids
                    pl.BlockSpec((TV, D_pad), emb_index_map),              # emb tile
                    pl.BlockSpec((D_pad, P_pad), lambda n, v, *_: (0, 0)), # projT resident
                ],
                out_specs=pl.BlockSpec((TN, P_pad), lambda n, v, *_: (n, 0)),
                scratch_shapes=[pltpu.VMEM((TN, D_pad), jnp.float32)],
            ),
            # call args: (tmin, tmax, acc, ids_col, E_pad, PT_pad) -> acc is index 2
            input_output_aliases={2: 0},
            compiler_params=pltpu.CompilerParams(
                dimension_semantics=("parallel", "arbitrary"),
                vmem_limit_bytes=vmem_limit,
            ),
        )(tmin, tmax, acc, ids_col, E_pad, PT_pad)

    def run(ids_col, tmin, tmax, E_list, PT_list):
        acc = jnp.zeros((N_pad, P_pad), jnp.float32)
        for i in range(n_clusters):
            acc = _cluster_call(acc, ids_col, tmin, tmax,
                                E_list[i], PT_list[i],
                                cutoff_ends[i], cutoff_ends[i + 1], TV_list[i])
        return acc

    out = jax.jit(run)(ids_col, tile_min, tile_max, E_list, PT_list)
    return out[:N, :d_proj].reshape(B, S, d_proj)


# ---------------------------------------------------------------------------
# References
# ---------------------------------------------------------------------------
def adaptive_embedding_ref(ids, emb_tables, emb_projs, cutoff_ends, d_proj):
    """Pure-f32 reference with the PyTorch forward semantics."""
    ids_flat = ids.reshape(-1)
    N = ids_flat.shape[0]
    out = jnp.zeros((N, d_proj), jnp.float32)
    for i in range(len(cutoff_ends) - 1):
        left, right = cutoff_ends[i], cutoff_ends[i + 1]
        mask = (ids_flat >= left) & (ids_flat < right)
        local = jnp.clip(ids_flat - left, 0, emb_tables[i].shape[0] - 1)
        contrib = emb_tables[i][local] @ emb_projs[i].T
        out = jnp.where(mask[:, None], contrib, out)
    out = out * (float(d_proj) ** 0.5)
    return out.reshape(*ids.shape, d_proj)


def adaptive_embedding_ref_quantized(ids, params):
    """Reference on the exact padded / scale-folded bf16 weights the kernel sees."""
    E_list, PT_list = params["E_list"], params["PT_list"]
    cutoff_ends = params["cutoff_ends"]
    d_proj = params["d_proj"]
    ids_flat = ids.reshape(-1)
    out = jnp.zeros((ids_flat.shape[0], params["P_pad"]), jnp.float32)
    for i in range(len(cutoff_ends) - 1):
        left, right = cutoff_ends[i], cutoff_ends[i + 1]
        E = E_list[i].astype(jnp.float32)
        PT = PT_list[i].astype(jnp.float32)
        mask = (ids_flat >= left) & (ids_flat < right)
        local = jnp.clip(ids_flat - left, 0, E.shape[0] - 1)
        contrib = E[local] @ PT
        out = out + jnp.where(mask[:, None], contrib, 0.0)
    return out[:, :d_proj].reshape(*ids.shape, d_proj)


# ---------------------------------------------------------------------------
if __name__ == "__main__":
    # Module hyper-params (small, but exercising multiple row tiles and vocab tiles).
    n_tokens = 512
    d_embed = 32
    d_proj = 32
    cutoffs = [128, 256]
    div_val = 4
    cutoff_ends = [0] + cutoffs + [n_tokens]
    n_clusters = len(cutoff_ends) - 1

    B, S = 2, 8

    key = jax.random.PRNGKey(0)
    keys = jax.random.split(key, 2 * n_clusters + 1)

    emb_tables, emb_projs = [], []
    for i in range(n_clusters):
        left, right = cutoff_ends[i], cutoff_ends[i + 1]
        d_emb_i = d_embed // (div_val ** i)
        emb_tables.append(
            jax.random.normal(keys[2 * i], (right - left, d_emb_i), jnp.float32))
        emb_projs.append(
            jax.random.normal(keys[2 * i + 1], (d_proj, d_emb_i), jnp.float32))

    ids = jax.random.randint(keys[-1], (B, S), 0, n_tokens, dtype=jnp.int32)

    # Small tiles to exercise the tiled grid (2 row tiles; last cluster has 2 vocab tiles).
    params = prepare_adaptive_embedding_params(
        emb_tables, emb_projs, cutoff_ends, d_proj, tile_v=128)

    out = adaptive_embedding_pallas(ids, params, tile_n=8)
    out = jax.block_until_ready(out)
    assert out.shape == (B, S, d_proj), out.shape

    # (1) Tight check against a reference using the identical bf16 padded weights.
    ref_q = adaptive_embedding_ref_quantized(ids, params)
    assert jnp.allclose(out, ref_q, atol=2e-3, rtol=2e-3), "mismatch vs quantized reference"

    # (2) Semantic check against the full-f32 PyTorch-style reference
    #     (difference is only the deliberate bf16 weight quantization).
    ref = adaptive_embedding_ref(ids, emb_tables, emb_projs, cutoff_ends, d_proj)
    rel_err = float(jnp.max(jnp.abs(out - ref)) / (jnp.max(jnp.abs(ref)) + 1e-6))
    assert rel_err < 3e-2, f"relative error vs f32 reference too large: {rel_err}"

    print("KERNEL_OK")
</pallas_src>

<mosaic_0001>
module attributes {stable_mosaic.version = 11 : i64} {
  func.func @_cluster_kernel(%arg0: i32, %arg1: i32, %arg2: memref<2xi32, #tpu.memory_space<smem>>, %arg3: memref<2xi32, #tpu.memory_space<smem>>, %arg4: memref<8x128xf32, #tpu.memory_space<vmem>>, %arg5: memref<8x1xi32, #tpu.memory_space<vmem>>, %arg6: memref<128x128xbf16, #tpu.memory_space<vmem>>, %arg7: memref<128x128xbf16, #tpu.memory_space<vmem>>, %arg8: memref<8x128xf32, #tpu.memory_space<vmem>>, %arg9: memref<8x128xf32, #tpu.memory_space<vmem>>) attributes {dimension_semantics = [#tpu.dimension_semantics<parallel>, #tpu.dimension_semantics<arbitrary>], iteration_bounds = array<i64: 2, 1>, scalar_prefetch = 2 : i64, scratch_operands = 1 : i64, tpu.core_type = #tpu.core_type<tc>, window_params = [{transform_indices = @transform_0, window_bounds = array<i64: 8, 128>}, {transform_indices = @transform_1, window_bounds = array<i64: 8, 1>}, {transform_indices = @transform_2, window_bounds = array<i64: 128, 128>}, {pipeline_mode = #tpu.pipeline_mode<synchronous>, transform_indices = @transform_3, window_bounds = array<i64: 128, 128>}, {transform_indices = @transform_4, window_bounds = array<i64: 8, 128>}]} {
    %0 = arith.index_cast %arg0 : i32 to index
    %1 = memref.load %arg2[%0] : memref<2xi32, #tpu.memory_space<smem>>
    %2 = arith.index_cast %arg0 : i32 to index
    %3 = memref.load %arg3[%2] : memref<2xi32, #tpu.memory_space<smem>>
    %c128_i32 = arith.constant 128 : i32
    %4 = arith.muli %arg1, %c128_i32 : i32
    %c128_i32_0 = arith.constant 128 : i32
    %5 = arith.addi %c128_i32_0, %4 : i32
    %c128_i32_1 = arith.constant 128 : i32
    %6 = arith.addi %5, %c128_i32_1 : i32
    %c256_i32 = arith.constant 256 : i32
    %7 = arith.minsi %c256_i32, %6 : i32
    %c0_i32 = arith.constant 0 : i32
    %8 = arith.cmpi eq, %arg1, %c0_i32 : i32
    %9 = arith.extui %8 : i1 to i32
    %c0_i32_2 = arith.constant 0 : i32
    %10 = arith.cmpi ne, %9, %c0_i32_2 : i32
    scf.if %10 {
      %cst = arith.constant 0.000000e+00 : f32
      %27 = vector.broadcast %cst : f32 to vector<8x128xf32>
      %c0 = arith.constant 0 : index
      %c0_9 = arith.constant 0 : index
      %28 = vector.load %arg9[%c0, %c0_9] : memref<8x128xf32, #tpu.memory_space<vmem>>, vector<8x128xf32>
      tpu.vector_store %arg9[%c0, %c0_9], %27 {strides = array<i32>} : memref<8x128xf32, #tpu.memory_space<vmem>>, vector<8x128xf32>,
    } else {
    }
    %11 = arith.cmpi sge, %3, %5 : i32
    %12 = arith.cmpi slt, %1, %7 : i32
    %13 = arith.andi %11, %12 : i1
    %14 = arith.extui %13 : i1 to i32
    %c0_i32_3 = arith.constant 0 : i32
    %15 = arith.cmpi ne, %14, %c0_i32_3 : i32
    scf.if %15 {
      %c0 = arith.constant 0 : index
      %c0_9 = arith.constant 0 : index
      %27 = vector.load %arg5[%c0, %c0_9] : memref<8x1xi32, #tpu.memory_space<vmem>>, vector<8x1xi32>
      %28 = vector.broadcast %5 : i32 to vector<8x1xi32>
      %29 = arith.subi %27, %28 : vector<8x1xi32>
      %30 = tpu.iota {dimensions = array<i32: 1>} : vector<8x128xi32>
      %31 = vector.broadcast %29 : vector<8x1xi32> to vector<8x128xi32>
      %32 = arith.cmpi eq, %31, %30 : vector<8x128xi32>
      %33 = arith.extui %32 : vector<8x128xi1> to vector<8x128xi32>
      %34 = arith.sitofp %33 : vector<8x128xi32> to vector<8x128xf32>
      %35 = arith.truncf %34 : vector<8x128xf32> to vector<8x128xbf16>
      %c0_10 = arith.constant 0 : index
      %c0_11 = arith.constant 0 : index
      %36 = vector.load %arg9[%c0_10, %c0_11] : memref<8x128xf32, #tpu.memory_space<vmem>>, vector<8x128xf32>
      %c0_12 = arith.constant 0 : index
      %c0_13 = arith.constant 0 : index
      %37 = vector.load %arg6[%c0_12, %c0_13] : memref<128x128xbf16, #tpu.memory_space<vmem>>, vector<128x128xbf16>
      %cst = arith.constant dense<0.000000e+00> : vector<8x128xf32>
      %38 = tpu.matmul %35, %37, %cst {dimension_numbers = #tpu.dot_dimension_numbers<[1], [0], [0], [1], [0, 0, 1, 1], [], []>} : vector<8x128xbf16>, vector<128x128xbf16>, vector<8x128xf32> -> vector<8x128xf32>
      %39 = arith.addf %36, %38 : vector<8x128xf32>
      %c0_14 = arith.constant 0 : index
      %c0_15 = arith.constant 0 : index
      %40 = vector.load %arg9[%c0_14, %c0_15] : memref<8x128xf32, #tpu.memory_space<vmem>>, vector<8x128xf32>
      tpu.vector_store %arg9[%c0_14, %c0_15], %39 {strides = array<i32>} : memref<8x128xf32, #tpu.memory_space<vmem>>, vector<8x128xf32>,
    } else {
    }
    %c0_i32_4 = arith.constant 0 : i32
    %16 = arith.cmpi eq, %arg1, %c0_i32_4 : i32
    %c128_i32_5 = arith.constant 128 : i32
    %17 = arith.cmpi sge, %3, %c128_i32_5 : i32
    %c256_i32_6 = arith.constant 256 : i32
    %18 = arith.cmpi slt, %1, %c256_i32_6 : i32
    %19 = arith.andi %17, %18 : i1
    %20 = arith.andi %16, %19 : i1
    %21 = arith.extui %20 : i1 to i32
    %c0_i32_7 = arith.constant 0 : i32
    %22 = arith.cmpi ne, %21, %c0_i32_7 : i32
    scf.if %22 {
      %c0 = arith.constant 0 : index
      %c0_9 = arith.constant 0 : index
      %27 = vector.load %arg4[%c0, %c0_9] : memref<8x128xf32, #tpu.memory_space<vmem>>, vector<8x128xf32>
      %c0_10 = arith.constant 0 : index
      %c0_11 = arith.constant 0 : index
      %28 = vector.load %arg9[%c0_10, %c0_11] : memref<8x128xf32, #tpu.memory_space<vmem>>, vector<8x128xf32>
      %29 = arith.truncf %28 : vector<8x128xf32> to vector<8x128xbf16>
      %c0_12 = arith.constant 0 : index
      %c0_13 = arith.constant 0 : index
      %30 = vector.load %arg7[%c0_12, %c0_13] : memref<128x128xbf16, #tpu.memory_space<vmem>>, vector<128x128xbf16>
      %cst = arith.constant dense<0.000000e+00> : vector<8x128xf32>
      %31 = tpu.matmul %29, %30, %cst {dimension_numbers = #tpu.dot_dimension_numbers<[1], [0], [0], [1], [0, 0, 1, 1], [], []>} : vector<8x128xbf16>, vector<128x128xbf16>, vector<8x128xf32> -> vector<8x128xf32>
      %32 = arith.addf %27, %31 : vector<8x128xf32>
      %c0_14 = arith.constant 0 : index
      %c0_15 = arith.constant 0 : index
      %33 = vector.load %arg8[%c0_14, %c0_15] : memref<8x128xf32, #tpu.memory_space<vmem>>, vector<8x128xf32>
      tpu.vector_store %arg8[%c0_14, %c0_15], %32 {strides = array<i32>} : memref<8x128xf32, #tpu.memory_space<vmem>>, vector<8x128xf32>,
    } else {
    }
    %true = arith.constant true
    %23 = arith.xori %19, %true : i1
    %24 = arith.andi %16, %23 : i1
    %25 = arith.extui %24 : i1 to i32
    %c0_i32_8 = arith.constant 0 : i32
    %26 = arith.cmpi ne, %25, %c0_i32_8 : i32
    scf.if %26 {
      %c0 = arith.constant 0 : index
      %c0_9 = arith.constant 0 : index
      %27 = vector.load %arg4[%c0, %c0_9] : memref<8x128xf32, #tpu.memory_space<vmem>>, vector<8x128xf32>
      %c0_10 = arith.constant 0 : index
      %c0_11 = arith.constant 0 : index
      %28 = vector.load %arg8[%c0_10, %c0_11] : memref<8x128xf32, #tpu.memory_space<vmem>>, vector<8x128xf32>
      tpu.vector_store %arg8[%c0_10, %c0_11], %27 {strides = array<i32>} : memref<8x128xf32, #tpu.memory_space<vmem>>, vector<8x128xf32>,
    } else {
    }
    return
  }
  func.func @transform_0(%arg0: i32, %arg1: i32, %arg2: memref<2xi32, #tpu.memory_space<smem>>, %arg3: memref<2xi32, #tpu.memory_space<smem>>) -> (i32, i32) {
    %c0_i32 = arith.constant 0 : i32
    %c0_i32_0 = arith.constant 0 : i32
    return %arg0, %c0_i32 : i32, i32
  }
  func.func @transform_1(%arg0: i32, %arg1: i32, %arg2: memref<2xi32, #tpu.memory_space<smem>>, %arg3: memref<2xi32, #tpu.memory_space<smem>>) -> (i32, i32) {
    %c0_i32 = arith.constant 0 : i32
    %c0_i32_0 = arith.constant 0 : i32
    return %arg0, %c0_i32 : i32, i32
  }
  func.func @transform_2(%arg0: i32, %arg1: i32, %arg2: memref<2xi32, #tpu.memory_space<smem>>, %arg3: memref<2xi32, #tpu.memory_space<smem>>) -> (i32, i32) {
    %0 = arith.index_cast %arg0 : i32 to index
    %1 = memref.load %arg2[%0] : memref<2xi32, #tpu.memory_space<smem>>
    %c128_i32 = arith.constant 128 : i32
    %2 = arith.subi %1, %c128_i32 : i32
    %c0_i32 = arith.constant 0 : i32
    %c127_i32 = arith.constant 127 : i32
    %3 = arith.maxsi %c0_i32, %2 : i32
    %4 = arith.minsi %c127_i32, %3 : i32
    %c128_i32_0 = arith.constant 128 : i32
    %5 = arith.divsi %4, %c128_i32_0 : i32
    %6 = arith.index_cast %arg0 : i32 to index
    %7 = memref.load %arg3[%6] : memref<2xi32, #tpu.memory_space<smem>>
    %c128_i32_1 = arith.constant 128 : i32
    %8 = arith.subi %7, %c128_i32_1 : i32
    %c0_i32_2 = arith.constant 0 : i32
    %c127_i32_3 = arith.constant 127 : i32
    %9 = arith.maxsi %c0_i32_2, %8 : i32
    %10 = arith.minsi %c127_i32_3, %9 : i32
    %c128_i32_4 = arith.constant 128 : i32
    %11 = arith.divsi %10, %c128_i32_4 : i32
    %12 = arith.minsi %5, %11 : i32
    %13 = arith.maxsi %5, %11 : i32
    %14 = arith.maxsi %12, %arg1 : i32
    %15 = arith.minsi %13, %14 : i32
    %c0_i32_5 = arith.constant 0 : i32
    %c0_i32_6 = arith.constant 0 : i32
    return %15, %c0_i32_5 : i32, i32
  }
  func.func @transform_3(%arg0: i32, %arg1: i32, %arg2: memref<2xi32, #tpu.memory_space<smem>>, %arg3: memref<2xi32, #tpu.memory_space<smem>>) -> (i32, i32) {
    %c0_i32 = arith.constant 0 : i32
    %c0_i32_0 = arith.constant 0 : i32
    %c0_i32_1 = arith.constant 0 : i32
    return %c0_i32, %c0_i32_0 : i32, i32
  }
  func.func @transform_4(%arg0: i32, %arg1: i32, %arg2: memref<2xi32, #tpu.memory_space<smem>>, %arg3: memref<2xi32, #tpu.memory_space<smem>>) -> (i32, i32) {
    %c0_i32 = arith.constant 0 : i32
    %c0_i32_0 = arith.constant 0 : i32
    return %arg0, %c0_i32 : i32, i32
  }
}

module attributes {stable_mosaic.version = 11 : i64} {
  func.func @_cluster_kernel(%arg0: i32, %arg1: i32, %arg2: memref<2xi32, #tpu.memory_space<smem>>, %arg3: memref<2xi32, #tpu.memory_space<smem>>, %arg4: memref<8x128xf32, #tpu.memory_space<vmem>>, %arg5: memref<8x1xi32, #tpu.memory_space<vmem>>, %arg6: memref<128x128xbf16, #tpu.memory_space<vmem>>, %arg7: memref<128x128xbf16, #tpu.memory_space<vmem>>, %arg8: memref<8x128xf32, #tpu.memory_space<vmem>>, %arg9: memref<8x128xf32, #tpu.memory_space<vmem>>) attributes {dimension_semantics = [#tpu.dimension_semantics<parallel>, #tpu.dimension_semantics<arbitrary>], iteration_bounds = array<i64: 2, 1>, scalar_prefetch = 2 : i64, scratch_operands = 1 : i64, tpu.core_type = #tpu.core_type<tc>, window_params = [{transform_indices = @transform_0, window_bounds = array<i64: 8, 128>}, {transform_indices = @transform_1, window_bounds = array<i64: 8, 1>}, {transform_indices = @transform_2, window_bounds = array<i64: 128, 128>}, {pipeline_mode = #tpu.pipeline_mode<synchronous>, transform_indices = @transform_3, window_bounds = array<i64: 128, 128>}, {transform_indices = @transform_4, window_bounds = array<i64: 8, 128>}]} {
    %0 = arith.index_cast %arg0 : i32 to index
    %1 = memref.load %arg2[%0] : memref<2xi32, #tpu.memory_space<smem>>
    %2 = arith.index_cast %arg0 : i32 to index
    %3 = memref.load %arg3[%2] : memref<2xi32, #tpu.memory_space<smem>>
    %c128_i32 = arith.constant 128 : i32
    %4 = arith.muli %arg1, %c128_i32 : i32
    %c0_i32 = arith.constant 0 : i32
    %5 = arith.addi %c0_i32, %4 : i32
    %c128_i32_0 = arith.constant 128 : i32
    %6 = arith.addi %5, %c128_i32_0 : i32
    %c128_i32_1 = arith.constant 128 : i32
    %7 = arith.minsi %c128_i32_1, %6 : i32
    %c0_i32_2 = arith.constant 0 : i32
    %8 = arith.cmpi eq, %arg1, %c0_i32_2 : i32
    %9 = arith.extui %8 : i1 to i32
    %c0_i32_3 = arith.constant 0 : i32
    %10 = arith.cmpi ne, %9, %c0_i32_3 : i32
    scf.if %10 {
      %cst = arith.constant 0.000000e+00 : f32
      %27 = vector.broadcast %cst : f32 to vector<8x128xf32>
      %c0 = arith.constant 0 : index
      %c0_10 = arith.constant 0 : index
      %28 = vector.load %arg9[%c0, %c0_10] : memref<8x128xf32, #tpu.memory_space<vmem>>, vector<8x128xf32>
      tpu.vector_store %arg9[%c0, %c0_10], %27 {strides = array<i32>} : memref<8x128xf32, #tpu.memory_space<vmem>>, vector<8x128xf32>,
    } else {
    }
    %11 = arith.cmpi sge, %3, %5 : i32
    %12 = arith.cmpi slt, %1, %7 : i32
    %13 = arith.andi %11, %12 : i1
    %14 = arith.extui %13 : i1 to i32
    %c0_i32_4 = arith.constant 0 : i32
    %15 = arith.cmpi ne, %14, %c0_i32_4 : i32
    scf.if %15 {
      %c0 = arith.constant 0 : index
      %c0_10 = arith.constant 0 : index
      %27 = vector.load %arg5[%c0, %c0_10] : memref<8x1xi32, #tpu.memory_space<vmem>>, vector<8x1xi32>
      %28 = vector.broadcast %5 : i32 to vector<8x1xi32>
      %29 = arith.subi %27, %28 : vector<8x1xi32>
      %30 = tpu.iota {dimensions = array<i32: 1>} : vector<8x128xi32>
      %31 = vector.broadcast %29 : vector<8x1xi32> to vector<8x128xi32>
      %32 = arith.cmpi eq, %31, %30 : vector<8x128xi32>
      %33 = arith.extui %32 : vector<8x128xi1> to vector<8x128xi32>
      %34 = arith.sitofp %33 : vector<8x128xi32> to vector<8x128xf32>
      %35 = arith.truncf %34 : vector<8x128xf32> to vector<8x128xbf16>
      %c0_11 = arith.constant 0 : index
      %c0_12 = arith.constant 0 : index
      %36 = vector.load %arg9[%c0_11, %c0_12] : memref<8x128xf32, #tpu.memory_space<vmem>>, vector<8x128xf32>
      %c0_13 = arith.constant 0 : index
      %c0_14 = arith.constant 0 : index
      %37 = vector.load %arg6[%c0_13, %c0_14] : memref<128x128xbf16, #tpu.memory_space<vmem>>, vector<128x128xbf16>
      %cst = arith.constant dense<0.000000e+00> : vector<8x128xf32>
      %38 = tpu.matmul %35, %37, %cst {dimension_numbers = #tpu.dot_dimension_numbers<[1], [0], [0], [1], [0, 0, 1, 1], [], []>} : vector<8x128xbf16>, vector<128x128xbf16>, vector<8x128xf32> -> vector<8x128xf32>
      %39 = arith.addf %36, %38 : vector<8x128xf32>
      %c0_15 = arith.constant 0 : index
      %c0_16 = arith.constant 0 : index
      %40 = vector.load %arg9[%c0_15, %c0_16] : memref<8x128xf32, #tpu.memory_space<vmem>>, vector<8x128xf32>
      tpu.vector_store %arg9[%c0_15, %c0_16], %39 {strides = array<i32>} : memref<8x128xf32, #tpu.memory_space<vmem>>, vector<8x128xf32>,
    } else {
    }
    %c0_i32_5 = arith.constant 0 : i32
    %16 = arith.cmpi eq, %arg1, %c0_i32_5 : i32
    %c0_i32_6 = arith.constant 0 : i32
    %17 = arith.cmpi sge, %3, %c0_i32_6 : i32
    %c128_i32_7 = arith.constant 128 : i32
    %18 = arith.cmpi slt, %1, %c128_i32_7 : i32
    %19 = arith.andi %17, %18 : i1
    %20 = arith.andi %16, %19 : i1
    %21 = arith.extui %20 : i1 to i32
    %c0_i32_8 = arith.constant 0 : i32
    %22 = arith.cmpi ne, %21, %c0_i32_8 : i32
    scf.if %22 {
      %c0 = arith.constant 0 : index
      %c0_10 = arith.constant 0 : index
      %27 = vector.load %arg4[%c0, %c0_10] : memref<8x128xf32, #tpu.memory_space<vmem>>, vector<8x128xf32>
      %c0_11 = arith.constant 0 : index
      %c0_12 = arith.constant 0 : index
      %28 = vector.load %arg9[%c0_11, %c0_12] : memref<8x128xf32, #tpu.memory_space<vmem>>, vector<8x128xf32>
      %29 = arith.truncf %28 : vector<8x128xf32> to vector<8x128xbf16>
      %c0_13 = arith.constant 0 : index
      %c0_14 = arith.constant 0 : index
      %30 = vector.load %arg7[%c0_13, %c0_14] : memref<128x128xbf16, #tpu.memory_space<vmem>>, vector<128x128xbf16>
      %cst = arith.constant dense<0.000000e+00> : vector<8x128xf32>
      %31 = tpu.matmul %29, %30, %cst {dimension_numbers = #tpu.dot_dimension_numbers<[1], [0], [0], [1], [0, 0, 1, 1], [], []>} : vector<8x128xbf16>, vector<128x128xbf16>, vector<8x128xf32> -> vector<8x128xf32>
      %32 = arith.addf %27, %31 : vector<8x128xf32>
      %c0_15 = arith.constant 0 : index
      %c0_16 = arith.constant 0 : index
      %33 = vector.load %arg8[%c0_15, %c0_16] : memref<8x128xf32, #tpu.memory_space<vmem>>, vector<8x128xf32>
      tpu.vector_store %arg8[%c0_15, %c0_16], %32 {strides = array<i32>} : memref<8x128xf32, #tpu.memory_space<vmem>>, vector<8x128xf32>,
    } else {
    }
    %true = arith.constant true
    %23 = arith.xori %19, %true : i1
    %24 = arith.andi %16, %23 : i1
    %25 = arith.extui %24 : i1 to i32
    %c0_i32_9 = arith.constant 0 : i32
    %26 = arith.cmpi ne, %25, %c0_i32_9 : i32
    scf.if %26 {
      %c0 = arith.constant 0 : index
      %c0_10 = arith.constant 0 : index
      %27 = vector.load %arg4[%c0, %c0_10] : memref<8x128xf32, #tpu.memory_space<vmem>>, vector<8x128xf32>
      %c0_11 = arith.constant 0 : index
      %c0_12 = arith.constant 0 : index
      %28 = vector.load %arg8[%c0_11, %c0_12] : memref<8x128xf32, #tpu.memory_space<vmem>>, vector<8x128xf32>
      tpu.vector_store %arg8[%c0_11, %c0_12], %27 {strides = array<i32>} : memref<8x128xf32, #tpu.memory_space<vmem>>, vector<8x128xf32>,
    } else {
    }
    return
  }
  func.func @transform_0(%arg0: i32, %arg1: i32, %arg2: memref<2xi32, #tpu.memory_space<smem>>, %arg3: memref<2xi32, #tpu.memory_space<smem>>) -> (i32, i32) {
    %c0_i32 = arith.constant 0 : i32
    %c0_i32_0 = arith.constant 0 : i32
    return %arg0, %c0_i32 : i32, i32
  }
  func.func @transform_1(%arg0: i32, %arg1: i32, %arg2: memref<2xi32, #tpu.memory_space<smem>>, %arg3: memref<2xi32, #tpu.memory_space<smem>>) -> (i32, i32) {
    %c0_i32 = arith.constant 0 : i32
    %c0_i32_0 = arith.constant 0 : i32
    return %arg0, %c0_i32 : i32, i32
  }
  func.func @transform_2(%arg0: i32, %arg1: i32, %arg2: memref<2xi32, #tpu.memory_space<smem>>, %arg3: memref<2xi32, #tpu.memory_space<smem>>) -> (i32, i32) {
    %0 = arith.index_cast %arg0 : i32 to index
    %1 = memref.load %arg2[%0] : memref<2xi32, #tpu.memory_space<smem>>
    %c0_i32 = arith.constant 0 : i32
    %2 = arith.subi %1, %c0_i32 : i32
    %c0_i32_0 = arith.constant 0 : i32
    %c127_i32 = arith.constant 127 : i32
    %3 = arith.maxsi %c0_i32_0, %2 : i32
    %4 = arith.minsi %c127_i32, %3 : i32
    %c128_i32 = arith.constant 128 : i32
    %5 = arith.divsi %4, %c128_i32 : i32
    %6 = arith.index_cast %arg0 : i32 to index
    %7 = memref.load %arg3[%6] : memref<2xi32, #tpu.memory_space<smem>>
    %c0_i32_1 = arith.constant 0 : i32
    %8 = arith.subi %7, %c0_i32_1 : i32
    %c0_i32_2 = arith.constant 0 : i32
    %c127_i32_3 = arith.constant 127 : i32
    %9 = arith.maxsi %c0_i32_2, %8 : i32
    %10 = arith.minsi %c127_i32_3, %9 : i32
    %c128_i32_4 = arith.constant 128 : i32
    %11 = arith.divsi %10, %c128_i32_4 : i32
    %12 = arith.minsi %5, %11 : i32
    %13 = arith.maxsi %5, %11 : i32
    %14 = arith.maxsi %12, %arg1 : i32
    %15 = arith.minsi %13, %14 : i32
    %c0_i32_5 = arith.constant 0 : i32
    %c0_i32_6 = arith.constant 0 : i32
    return %15, %c0_i32_5 : i32, i32
  }
  func.func @transform_3(%arg0: i32, %arg1: i32, %arg2: memref<2xi32, #tpu.memory_space<smem>>, %arg3: memref<2xi32, #tpu.memory_space<smem>>) -> (i32, i32) {
    %c0_i32 = arith.constant 0 : i32
    %c0_i32_0 = arith.constant 0 : i32
    %c0_i32_1 = arith.constant 0 : i32
    return %c0_i32, %c0_i32_0 : i32, i32
  }
  func.func @transform_4(%arg0: i32, %arg1: i32, %arg2: memref<2xi32, #tpu.memory_space<smem>>, %arg3: memref<2xi32, #tpu.memory_space<smem>>) -> (i32, i32) {
    %c0_i32 = arith.constant 0 : i32
    %c0_i32_0 = arith.constant 0 : i32
    return %arg0, %c0_i32 : i32, i32
  }
}

module attributes {stable_mosaic.version = 11 : i64} {
  func.func @_cluster_kernel(%arg0: i32, %arg1: i32, %arg2: memref<2xi32, #tpu.memory_space<smem>>, %arg3: memref<2xi32, #tpu.memory_space<smem>>, %arg4: memref<8x128xf32, #tpu.memory_space<vmem>>, %arg5: memref<8x1xi32, #tpu.memory_space<vmem>>, %arg6: memref<128x128xbf16, #tpu.memory_space<vmem>>, %arg7: memref<128x128xbf16, #tpu.memory_space<vmem>>, %arg8: memref<8x128xf32, #tpu.memory_space<vmem>>, %arg9: memref<8x128xf32, #tpu.memory_space<vmem>>) attributes {dimension_semantics = [#tpu.dimension_semantics<parallel>, #tpu.dimension_semantics<arbitrary>], iteration_bounds = array<i64: 2, 2>, scalar_prefetch = 2 : i64, scratch_operands = 1 : i64, tpu.core_type = #tpu.core_type<tc>, window_params = [{transform_indices = @transform_0, window_bounds = array<i64: 8, 128>}, {transform_indices = @transform_1, window_bounds = array<i64: 8, 1>}, {transform_indices = @transform_2, window_bounds = array<i64: 128, 128>}, {pipeline_mode = #tpu.pipeline_mode<synchronous>, transform_indices = @transform_3, window_bounds = array<i64: 128, 128>}, {transform_indices = @transform_4, window_bounds = array<i64: 8, 128>}]} {
    %0 = arith.index_cast %arg0 : i32 to index
    %1 = memref.load %arg2[%0] : memref<2xi32, #tpu.memory_space<smem>>
    %2 = arith.index_cast %arg0 : i32 to index
    %3 = memref.load %arg3[%2] : memref<2xi32, #tpu.memory_space<smem>>
    %c128_i32 = arith.constant 128 : i32
    %4 = arith.muli %arg1, %c128_i32 : i32
    %c256_i32 = arith.constant 256 : i32
    %5 = arith.addi %c256_i32, %4 : i32
    %c128_i32_0 = arith.constant 128 : i32
    %6 = arith.addi %5, %c128_i32_0 : i32
    %c512_i32 = arith.constant 512 : i32
    %7 = arith.minsi %c512_i32, %6 : i32
    %c0_i32 = arith.constant 0 : i32
    %8 = arith.cmpi eq, %arg1, %c0_i32 : i32
    %9 = arith.extui %8 : i1 to i32
    %c0_i32_1 = arith.constant 0 : i32
    %10 = arith.cmpi ne, %9, %c0_i32_1 : i32
    scf.if %10 {
      %cst = arith.constant 0.000000e+00 : f32
      %27 = vector.broadcast %cst : f32 to vector<8x128xf32>
      %c0 = arith.constant 0 : index
      %c0_7 = arith.constant 0 : index
      %28 = vector.load %arg9[%c0, %c0_7] : memref<8x128xf32, #tpu.memory_space<vmem>>, vector<8x128xf32>
      tpu.vector_store %arg9[%c0, %c0_7], %27 {strides = array<i32>} : memref<8x128xf32, #tpu.memory_space<vmem>>, vector<8x128xf32>,
    } else {
    }
    %11 = arith.cmpi sge, %3, %5 : i32
    %12 = arith.cmpi slt, %1, %7 : i32
    %13 = arith.andi %11, %12 : i1
    %14 = arith.extui %13 : i1 to i32
    %c0_i32_2 = arith.constant 0 : i32
    %15 = arith.cmpi ne, %14, %c0_i32_2 : i32
    scf.if %15 {
      %c0 = arith.constant 0 : index
      %c0_7 = arith.constant 0 : index
      %27 = vector.load %arg5[%c0, %c0_7] : memref<8x1xi32, #tpu.memory_space<vmem>>, vector<8x1xi32>
      %28 = vector.broadcast %5 : i32 to vector<8x1xi32>
      %29 = arith.subi %27, %28 : vector<8x1xi32>
      %30 = tpu.iota {dimensions = array<i32: 1>} : vector<8x128xi32>
      %31 = vector.broadcast %29 : vector<8x1xi32> to vector<8x128xi32>
      %32 = arith.cmpi eq, %31, %30 : vector<8x128xi32>
      %33 = arith.extui %32 : vector<8x128xi1> to vector<8x128xi32>
      %34 = arith.sitofp %33 : vector<8x128xi32> to vector<8x128xf32>
      %35 = arith.truncf %34 : vector<8x128xf32> to vector<8x128xbf16>
      %c0_8 = arith.constant 0 : index
      %c0_9 = arith.constant 0 : index
      %36 = vector.load %arg9[%c0_8, %c0_9] : memref<8x128xf32, #tpu.memory_space<vmem>>, vector<8x128xf32>
      %c0_10 = arith.constant 0 : index
      %c0_11 = arith.constant 0 : index
      %37 = vector.load %arg6[%c0_10, %c0_11] : memref<128x128xbf16, #tpu.memory_space<vmem>>, vector<128x128xbf16>
      %cst = arith.constant dense<0.000000e+00> : vector<8x128xf32>
      %38 = tpu.matmul %35, %37, %cst {dimension_numbers = #tpu.dot_dimension_numbers<[1], [0], [0], [1], [0, 0, 1, 1], [], []>} : vector<8x128xbf16>, vector<128x128xbf16>, vector<8x128xf32> -> vector<8x128xf32>
      %39 = arith.addf %36, %38 : vector<8x128xf32>
      %c0_12 = arith.constant 0 : index
      %c0_13 = arith.constant 0 : index
      %40 = vector.load %arg9[%c0_12, %c0_13] : memref<8x128xf32, #tpu.memory_space<vmem>>, vector<8x128xf32>
      tpu.vector_store %arg9[%c0_12, %c0_13], %39 {strides = array<i32>} : memref<8x128xf32, #tpu.memory_space<vmem>>, vector<8x128xf32>,
    } else {
    }
    %c1_i32 = arith.constant 1 : i32
    %16 = arith.cmpi eq, %arg1, %c1_i32 : i32
    %c256_i32_3 = arith.constant 256 : i32
    %17 = arith.cmpi sge, %3, %c256_i32_3 : i32
    %c512_i32_4 = arith.constant 512 : i32
    %18 = arith.cmpi slt, %1, %c512_i32_4 : i32
    %19 = arith.andi %17, %18 : i1
    %20 = arith.andi %16, %19 : i1
    %21 = arith.extui %20 : i1 to i32
    %c0_i32_5 = arith.constant 0 : i32
    %22 = arith.cmpi ne, %21, %c0_i32_5 : i32
    scf.if %22 {
      %c0 = arith.constant 0 : index
      %c0_7 = arith.constant 0 : index
      %27 = vector.load %arg4[%c0, %c0_7] : memref<8x128xf32, #tpu.memory_space<vmem>>, vector<8x128xf32>
      %c0_8 = arith.constant 0 : index
      %c0_9 = arith.constant 0 : index
      %28 = vector.load %arg9[%c0_8, %c0_9] : memref<8x128xf32, #tpu.memory_space<vmem>>, vector<8x128xf32>
      %29 = arith.truncf %28 : vector<8x128xf32> to vector<8x128xbf16>
      %c0_10 = arith.constant 0 : index
      %c0_11 = arith.constant 0 : index
      %30 = vector.load %arg7[%c0_10, %c0_11] : memref<128x128xbf16, #tpu.memory_space<vmem>>, vector<128x128xbf16>
      %cst = arith.constant dense<0.000000e+00> : vector<8x128xf32>
      %31 = tpu.matmul %29, %30, %cst {dimension_numbers = #tpu.dot_dimension_numbers<[1], [0], [0], [1], [0, 0, 1, 1], [], []>} : vector<8x128xbf16>, vector<128x128xbf16>, vector<8x128xf32> -> vector<8x128xf32>
      %32 = arith.addf %27, %31 : vector<8x128xf32>
      %c0_12 = arith.constant 0 : index
      %c0_13 = arith.constant 0 : index
      %33 = vector.load %arg8[%c0_12, %c0_13] : memref<8x128xf32, #tpu.memory_space<vmem>>, vector<8x128xf32>
      tpu.vector_store %arg8[%c0_12, %c0_13], %32 {strides = array<i32>} : memref<8x128xf32, #tpu.memory_space<vmem>>, vector<8x128xf32>,
    } else {
    }
    %true = arith.constant true
    %23 = arith.xori %19, %true : i1
    %24 = arith.andi %16, %23 : i1
    %25 = arith.extui %24 : i1 to i32
    %c0_i32_6 = arith.constant 0 : i32
    %26 = arith.cmpi ne, %25, %c0_i32_6 : i32
    scf.if %26 {
      %c0 = arith.constant 0 : index
      %c0_7 = arith.constant 0 : index
      %27 = vector.load %arg4[%c0, %c0_7] : memref<8x128xf32, #tpu.memory_space<vmem>>, vector<8x128xf32>
      %c0_8 = arith.constant 0 : index
      %c0_9 = arith.constant 0 : index
      %28 = vector.load %arg8[%c0_8, %c0_9] : memref<8x128xf32, #tpu.memory_space<vmem>>, vector<8x128xf32>
      tpu.vector_store %arg8[%c0_8, %c0_9], %27 {strides = array<i32>} : memref<8x128xf32, #tpu.memory_space<vmem>>, vector<8x128xf32>,
    } else {
    }
    return
  }
  func.func @transform_0(%arg0: i32, %arg1: i32, %arg2: memref<2xi32, #tpu.memory_space<smem>>, %arg3: memref<2xi32, #tpu.memory_space<smem>>) -> (i32, i32) {
    %c0_i32 = arith.constant 0 : i32
    %c0_i32_0 = arith.constant 0 : i32
    return %arg0, %c0_i32 : i32, i32
  }
  func.func @transform_1(%arg0: i32, %arg1: i32, %arg2: memref<2xi32, #tpu.memory_space<smem>>, %arg3: memref<2xi32, #tpu.memory_space<smem>>) -> (i32, i32) {
    %c0_i32 = arith.constant 0 : i32
    %c0_i32_0 = arith.constant 0 : i32
    return %arg0, %c0_i32 : i32, i32
  }
  func.func @transform_2(%arg0: i32, %arg1: i32, %arg2: memref<2xi32, #tpu.memory_space<smem>>, %arg3: memref<2xi32, #tpu.memory_space<smem>>) -> (i32, i32) {
    %0 = arith.index_cast %arg0 : i32 to index
    %1 = memref.load %arg2[%0] : memref<2xi32, #tpu.memory_space<smem>>
    %c256_i32 = arith.constant 256 : i32
    %2 = arith.subi %1, %c256_i32 : i32
    %c0_i32 = arith.constant 0 : i32
    %c255_i32 = arith.constant 255 : i32
    %3 = arith.maxsi %c0_i32, %2 : i32
    %4 = arith.minsi %c255_i32, %3 : i32
    %c128_i32 = arith.constant 128 : i32
    %5 = arith.divsi %4, %c128_i32 : i32
    %6 = arith.index_cast %arg0 : i32 to index
    %7 = memref.load %arg3[%6] : memref<2xi32, #tpu.memory_space<smem>>
    %c256_i32_0 = arith.constant 256 : i32
    %8 = arith.subi %7, %c256_i32_0 : i32
    %c0_i32_1 = arith.constant 0 : i32
    %c255_i32_2 = arith.constant 255 : i32
    %9 = arith.maxsi %c0_i32_1, %8 : i32
    %10 = arith.minsi %c255_i32_2, %9 : i32
    %c128_i32_3 = arith.constant 128 : i32
    %11 = arith.divsi %10, %c128_i32_3 : i32
    %12 = arith.minsi %5, %11 : i32
    %13 = arith.maxsi %5, %11 : i32
    %14 = arith.maxsi %12, %arg1 : i32
    %15 = arith.minsi %13, %14 : i32
    %c0_i32_4 = arith.constant 0 : i32
    %c0_i32_5 = arith.constant 0 : i32
    return %15, %c0_i32_4 : i32, i32
  }
  func.func @transform_3(%arg0: i32, %arg1: i32, %arg2: memref<2xi32, #tpu.memory_space<smem>>, %arg3: memref<2xi32, #tpu.memory_space<smem>>) -> (i32, i32) {
    %c0_i32 = arith.constant 0 : i32
    %c0_i32_0 = arith.constant 0 : i32
    %c0_i32_1 = arith.constant 0 : i32
    return %c0_i32, %c0_i32_0 : i32, i32
  }
  func.func @transform_4(%arg0: i32, %arg1: i32, %arg2: memref<2xi32, #tpu.memory_space<smem>>, %arg3: memref<2xi32, #tpu.memory_space<smem>>) -> (i32, i32) {
    %c0_i32 = arith.constant 0 : i32
    %c0_i32_0 = arith.constant 0 : i32
    return %arg0, %c0_i32 : i32, i32
  }
}

</mosaic_0001>

<llo_original>
// kernel: run.3
$region0: #{run.3}
  #allocation0 [shape = 'u32[]', space=smem, size = 0x4, offset = 0x4, fixed_abs, tag = 'smem constant byte address 0x4 - core index']
  #allocation1 [shape = 'u32[144,128]{1,0:T(1,128)}', space=vmem, size = 0x12000, scoped, tag = 'internal scratch']
  #allocation2 [shape = 'f32[8,128]{1,0:T(8,128)}', space=vmem, size = 0x1000, scoped, tag = 'scratch operand']
  #allocation3 [shape = 's32[1]{0}', space=sflag, size = 0x4, scoped, tag = 'scoped memory for run.3']
  #allocation4 [shape = 'u8[512]{0}', space=smem, size = 0x200, scoped, tag = 'prefetched SMEM operand 0']
  #allocation5 [shape = 'u8[512]{0}', space=smem, size = 0x200, scoped, tag = 'prefetched SMEM operand 1']
  %s0 = inlined_call_operand.vmem [shape: s32[2], index: 0, kind: input, shape index: {}]
  %s1 = inlined_call_operand.vmem [shape: s32[2], index: 1, kind: input, shape index: {}]
  %s2 = inlined_call_operand.vmem [shape: f32[16,128], index: 2, kind: input, shape index: {}, may-alias: {2,6}]
  %s3 = inlined_call_operand.vmem [shape: s32[16,1], index: 3, kind: input, shape index: {}]
  %s4 = inlined_call_operand.hbm [shape: bf16[128,128], index: 4, kind: input, shape index: {}]
  %s5 = inlined_call_operand.hbm [shape: bf16[128,128], index: 5, kind: input, shape index: {}]
  %s6 = inlined_call_operand.vmem [shape: f32[16,128], index: 6, kind: output, shape index: {}, may-alias: {2,6}]
  %s7 = sld [smem:[#allocation0]]
  $region73: #{run.3} parent=0
    _
  %s9 = ssub.s32 1, %s7
  %s10 = scalar_select 0, %s9, %s7
  %s11 = sshll.u32 %s0, 4
  %s12 = int_to_ptr.vmem [resolvable:$true] %s11
  %14 = dma.vmem_to_smem %s12, 16, [#allocation4], [#allocation3]
  %s15 = sshll.u32 %s1, 4
  %s16 = int_to_ptr.vmem [resolvable:$true] %s15
  %18 = dma.vmem_to_smem %s16, 16, [#allocation5], [#allocation3]
  %19 = dma.done [#allocation3], 32
  %20 = sfence
  $region1: #{run.3} parent=0
    #allocation6 [shape = 'u8[65536]{0}', space=vmem, size = 0x10000, scoped, tag = 'input window, operand 4']
    #allocation7 [shape = 's32[2]{0}', space=sflag, size = 0x8, scoped, tag = 'scoped memory for run.3']
    #allocation8 [shape = 'u8[32768]{0}', space=vmem, size = 0x8000, scoped, tag = 'input window, operand 5, single buffered']
    #allocation9 [shape = 's32[1]{0}', space=sflag, size = 0x4, scoped, tag = 'scoped memory for run.3']
    %21 = vsyncpa [#allocation7], 0
    %s22 = scalar_lea.sflag [#allocation7], 1
    %23 = vsyncpa %s22, 0
    %24 = vsyncpa [#allocation9], 0
    loop: start=0, step=1, limit=4
    $region2: #{run.3} parent=1 // loop_pre_header
      _
    $region3: #{run.3} parent=1 // loop_header
      %s26 = sphi 0, %s30
      %p27 = scmp.ge.s32.totalorder %s26, 4
      %s33 = sphi 0, %s45
      %s34 = sphi 0, %s41
      %s35 = sphi 0, %s33
      %s36 = sphi 0, %s34
      %s37 = sphi 0, %s35
      %s38 = sphi 0, %s36
      %s48 = sphi 0, %s50
      %s51 = sphi 0, %s48
      %s52 = sphi 0, %s51
      %s68 = sphi 0, %s52
      %s74 = sphi 0, %s76
      %s77 = sphi 0, %s74
      %s78 = sphi 0, %s77
      %s94 = sphi 0, %s78
      %s160 = sphi 0, %s162
      %s163 = sphi 0, %s160
      %s164 = sphi 0, %s163
      %s180 = sphi 0, %s164
      %s184 = sphi 0, %s184
      %s186 = sphi 0, %s184
      %s187 = sphi 0, %s186
      %s201 = sphi 0, %s187
      %s207 = sphi 0, %s209
      %s210 = sphi 0, %s207
      %s211 = sphi 0, %s210
      %s227 = sphi 0, %s211
    $region4: #{run.3} parent=1 // loop_header_branch
      %29 = sbr.rel (%p27) target = $region8
    $region5: #{run.3} parent=1 // loop_body
      %s31 = ssub.s32 %s26, 1
      %s32 = ssub.s32 %s26, 2
      %s39 = sadd.s32 1, %s34
      %p40 = scmp.ge.s32.totalorder %s39, 1
      %s41 = scalar_select %p40, 0, %s39
      %s42 = sadd.s32 1, %s33
      %s43 = scalar_select %p40, %s42, %s33
      %p44 = scmp.ge.s32.totalorder %s43, 2
      %s45 = scalar_select %p44, 0, %s43
      %s46 = ssub.s32 %s33, %s45
      %p47 = scmp.eq.s32.totalorder %s46, 0
      %s49 = sadd.s32 %s48, 1
      %s50 = scalar_select %p47, %s48, %s49
      %p53 = pneg %p47
      %p54 = scmp.eq.s32.totalorder %s26, 1
      %p55 = por %p53, %p54
      %p56 = scmp.ne.s32.totalorder %s48, %s51
      %p57 = scmp.eq.s32.totalorder %s26, 0
      %p58 = por %p56, %p57
      %p59 = scmp.ne.s32.totalorder %s48, %s51
      %p60 = scmp.eq.s32.totalorder %s31, 1
      %p61 = por %p59, %p60
      %p62 = scmp.ne.s32.totalorder %s51, %s52
      %p63 = scmp.eq.s32.totalorder %s31, 0
      %p64 = por %p62, %p63
      %p65 = scmp.ne.s32.totalorder %s51, %s52
      %p66 = scmp.eq.s32.totalorder %s32, 1
      %p67 = por %p65, %p66
      %p69 = scmp.ne.s32.totalorder %s52, %s68
      %p70 = scmp.eq.s32.totalorder %s32, 0
      %p71 = por %p69, %p70
      %s72 = ssub.s32 %s33, %s45
      %p73 = scmp.eq.s32.totalorder %s72, 0
      %s75 = sadd.s32 %s74, 1
      %s76 = scalar_select %p73, %s74, %s75
      %p79 = pneg %p73
      %p80 = scmp.eq.s32.totalorder %s26, 1
      %p81 = por %p79, %p80
      %p82 = scmp.ne.s32.totalorder %s74, %s77
      %p83 = scmp.eq.s32.totalorder %s26, 0
      %p84 = por %p82, %p83
      %p85 = scmp.ne.s32.totalorder %s74, %s77
      %p86 = scmp.eq.s32.totalorder %s31, 1
      %p87 = por %p85, %p86
      %p88 = scmp.ne.s32.totalorder %s77, %s78
      %p89 = scmp.eq.s32.totalorder %s31, 0
      %p90 = por %p88, %p89
      %p91 = scmp.ne.s32.totalorder %s77, %s78
      %p92 = scmp.eq.s32.totalorder %s32, 1
      %p93 = por %p91, %p92
      %p95 = scmp.ne.s32.totalorder %s78, %s94
      %p96 = scmp.eq.s32.totalorder %s32, 0
      %p97 = por %p95, %p96
      %s98 = sld [smem:[#allocation4 + %s33]]
      %p99 = scmp.gt.s32.totalorder %s98, 0
      %s100 = scalar_select %p99, %s98, 0
      %p101 = scmp.lt.s32.totalorder %s100, 127
      %s102 = scalar_select %p101, %s100, 127
      %p103 = scmp.lt.s32.totalorder %s102, 0
      %s104 = ssub.s32 0, %s102
      %s105 = scalar_select %p103, %s104, %s102
      %s106 = sshrl.u32 %s105, 7
      %s107 = ssub.s32 0, %s106
      %s108 = scalar_select %p103, %s107, %s106
      %s109 = sld [smem:[#allocation5 + %s33]]
      %p110 = scmp.gt.s32.totalorder %s109, 0
      %s111 = scalar_select %p110, %s109, 0
      %p112 = scmp.lt.s32.totalorder %s111, 127
      %s113 = scalar_select %p112, %s111, 127
      %p114 = scmp.lt.s32.totalorder %s113, 0
      %s115 = ssub.s32 0, %s113
      %s116 = scalar_select %p114, %s115, %s113
      %s117 = sshrl.u32 %s116, 7
      %s118 = ssub.s32 0, %s117
      %s119 = scalar_select %p114, %s118, %s117
      %p120 = scmp.lt.s32.totalorder %s108, %s119
      %s121 = scalar_select %p120, %s108, %s119
      %p122 = scmp.gt.s32.totalorder %s108, %s119
      %s123 = scalar_select %p122, %s108, %s119
      %p124 = scmp.gt.s32.totalorder %s121, %s34
      %s125 = scalar_select %p124, %s121, %s34
      %p126 = scmp.lt.s32.totalorder %s123, %s125
      %s127 = scalar_select %p126, %s123, %s125
      %s128 = sld [smem:[#allocation4 + %s45]]
      %p129 = scmp.gt.s32.totalorder %s128, 0
      %s130 = scalar_select %p129, %s128, 0
      %p131 = scmp.lt.s32.totalorder %s130, 127
      %s132 = scalar_select %p131, %s130, 127
      %p133 = scmp.lt.s32.totalorder %s132, 0
      %s134 = ssub.s32 0, %s132
      %s135 = scalar_select %p133, %s134, %s132
      %s136 = sshrl.u32 %s135, 7
      %s137 = ssub.s32 0, %s136
      %s138 = scalar_select %p133, %s137, %s136
      %s139 = sld [smem:[#allocation5 + %s45]]
      %p140 = scmp.gt.s32.totalorder %s139, 0
      %s141 = scalar_select %p140, %s139, 0
      %p142 = scmp.lt.s32.totalorder %s141, 127
      %s143 = scalar_select %p142, %s141, 127
      %p144 = scmp.lt.s32.totalorder %s143, 0
      %s145 = ssub.s32 0, %s143
      %s146 = scalar_select %p144, %s145, %s143
      %s147 = sshrl.u32 %s146, 7
      %s148 = ssub.s32 0, %s147
      %s149 = scalar_select %p144, %s148, %s147
      %p150 = scmp.lt.s32.totalorder %s138, %s149
      %s151 = scalar_select %p150, %s138, %s149
      %p152 = scmp.gt.s32.totalorder %s138, %s149
      %s153 = scalar_select %p152, %s138, %s149
      %p154 = scmp.gt.s32.totalorder %s151, %s41
      %s155 = scalar_select %p154, %s151, %s41
      %p156 = scmp.lt.s32.totalorder %s153, %s155
      %s157 = scalar_select %p156, %s153, %s155
      %s158 = ssub.s32 %s127, %s157
      %p159 = scmp.eq.s32.totalorder %s158, 0
      %s161 = sadd.s32 %s160, 1
      %s162 = scalar_select %p159, %s160, %s161
      %p165 = pneg %p159
      %p166 = scmp.eq.s32.totalorder %s26, 1
      %p167 = por %p165, %p166
      %p168 = scmp.ne.s32.totalorder %s160, %s163
      %p169 = scmp.eq.s32.totalorder %s26, 0
      %p170 = por %p168, %p169
      %p171 = scmp.ne.s32.totalorder %s160, %s163
      %p172 = scmp.eq.s32.totalorder %s31, 1
      %p173 = por %p171, %p172
      %p174 = scmp.ne.s32.totalorder %s163, %s164
      %p175 = scmp.eq.s32.totalorder %s31, 0
      %p176 = por %p174, %p175
      %p177 = scmp.ne.s32.totalorder %s163, %s164
      %p178 = scmp.eq.s32.totalorder %s32, 1
      %p179 = por %p177, %p178
      %p181 = scmp.ne.s32.totalorder %s164, %s180
      %p182 = scmp.eq.s32.totalorder %s32, 0
      %p183 = por %p181, %p182
      %s185 = sadd.s32 %s184, 1
      %p188 = scmp.eq.s32.totalorder %s26, 1
      %p189 = scmp.ne.s32.totalorder %s184, %s186
      %p190 = scmp.eq.s32.totalorder %s26, 0
      %p191 = por %p189, %p190
      %p192 = scmp.ne.s32.totalorder %s184, %s186
      %p193 = scmp.eq.s32.totalorder %s31, 1
      %p194 = por %p192, %p193
      %p195 = scmp.ne.s32.totalorder %s186, %s187
      %p196 = scmp.eq.s32.totalorder %s31, 0
      %p197 = por %p195, %p196
      %p198 = scmp.ne.s32.totalorder %s186, %s187
      %p199 = scmp.eq.s32.totalorder %s32, 1
      %p200 = por %p198, %p199
      %p202 = scmp.ne.s32.totalorder %s187, %s201
      %p203 = scmp.eq.s32.totalorder %s32, 0
      %p204 = por %p202, %p203
      %s205 = ssub.s32 %s33, %s45
      %p206 = scmp.eq.s32.totalorder %s205, 0
      %s208 = sadd.s32 %s207, 1
      %s209 = scalar_select %p206, %s207, %s208
      %p212 = pneg %p206
      %p213 = scmp.eq.s32.totalorder %s26, 1
      %p214 = por %p212, %p213
      %p215 = scmp.ne.s32.totalorder %s207, %s210
      %p216 = scmp.eq.s32.totalorder %s26, 0
      %p217 = por %p215, %p216
      %p218 = scmp.ne.s32.totalorder %s207, %s210
      %p219 = scmp.eq.s32.totalorder %s31, 1
      %p220 = por %p218, %p219
      %p221 = scmp.ne.s32.totalorder %s210, %s211
      %p222 = scmp.eq.s32.totalorder %s31, 0
      %p223 = por %p221, %p222
      %p224 = scmp.ne.s32.totalorder %s210, %s211
      %p225 = scmp.eq.s32.totalorder %s32, 1
      %p226 = por %p224, %p225
      %p228 = scmp.ne.s32.totalorder %s211, %s227
      %p229 = scmp.eq.s32.totalorder %s32, 0
      %p230 = por %p228, %p229
      %p231 = scmp.le.s32.totalorder 1, %s26
      %p232 = scmp.lt.s32.totalorder %s26, 3
      %p233 = pnand %p231, %p232
      %p234 = pneg %p233
      // Predicated region
      $region9: #{run.3} parent=5 // pred_check
        _
      $region10: #{run.3} parent=5 // pred_check_branch
        %236 = sbr.rel (%p233) target = $region12
      $region11: #{run.3} parent=5 // pred_region
        %s237 = ssub.s32 %s26, 1
        // Predicated region
        $region13: #{run.3} parent=11 // pred_check
          %p238 = pneg %p197
        $region14: #{run.3} parent=11 // pred_check_branch
          %240 = sbr.rel (%p238) target = $region16
        $region15: #{run.3} parent=11 // pred_region
          %s242 = ssub.s32 1024, 1024
          %243 = vsyncadd [#allocation9], %s242
          %s244 = sshll.u32 [#allocation8], 4
          %s245 = int_to_ptr.vmem [resolvable:$true] %s244
          %250 = dma.hbm_to_vmem [thread:$0]  %s5, 1024, %s245, [#allocation9], 64, 64, 4
        $region16: #{run.3} parent=11 // pred_fallthru
          _
      $region12: #{run.3} parent=5 // pred_fallthru
        _
      %p251 = scmp.lt.s32.totalorder %s26, 2
      // Predicated region
      $region17: #{run.3} parent=5 // pred_check
        %p252 = pneg %p251
      $region18: #{run.3} parent=5 // pred_check_branch
        %254 = sbr.rel (%p252) target = $region20
      $region19: #{run.3} parent=5 // pred_region
        // Predicated region
        $region21: #{run.3} parent=19 // pred_check
          %p255 = pneg %p58
        $region22: #{run.3} parent=19 // pred_check_branch
          %257 = sbr.rel (%p255) target = $region24
        $region23: #{run.3} parent=19 // pred_region
          %p258 = scmp.lt.s32.totalorder %s33, 1
          %s259 = scalar_select %p258, %s33, 1
          %s260 = smul.addr %s259, 8
          %s261 = scalar_lea.vmem %s2, %s260
        $region24: #{run.3} parent=19 // pred_fallthru
          _
        // Predicated region
        $region25: #{run.3} parent=19 // pred_check
          %p262 = pneg %p84
        $region26: #{run.3} parent=19 // pred_check_branch
          %264 = sbr.rel (%p262) target = $region28
        $region27: #{run.3} parent=19 // pred_region
          %p265 = scmp.lt.s32.totalorder %s33, 1
          %s266 = scalar_select %p265, %s33, 1
          %s267 = smul.addr %s266, 8
          %s268 = scalar_lea.vmem %s3, %s267
        $region28: #{run.3} parent=19 // pred_fallthru
          _
        // Predicated region
        $region29: #{run.3} parent=19 // pred_check
          %p269 = pneg %p170
        $region30: #{run.3} parent=19 // pred_check_branch
          %271 = sbr.rel (%p269) target = $region32
        $region31: #{run.3} parent=19 // pred_region
          %s272 = sand.u32 %s160, 1
          %s273 = scalar_lea.sflag [#allocation7], %s272
          %s274 = sand.u32 %s160, 1
          %s275 = smul.addr %s274, 64
          %s276 = scalar_lea.vmem [#allocation6], %s275
          %s277 = sld [smem:[#allocation4 + %s33]]
          %p278 = scmp.gt.s32.totalorder %s277, 0
          %s279 = scalar_select %p278, %s277, 0
          %p280 = scmp.lt.s32.totalorder %s279, 127
          %s281 = scalar_select %p280, %s279, 127
          %p282 = scmp.lt.s32.totalorder %s281, 0
          %s283 = ssub.s32 0, %s281
          %s284 = scalar_select %p282, %s283, %s281
          %s285 = sshrl.u32 %s284, 7
          %s286 = ssub.s32 0, %s285
          %s287 = scalar_select %p282, %s286, %s285
          %s288 = sld [smem:[#allocation5 + %s33]]
          %p289 = scmp.gt.s32.totalorder %s288, 0
          %s290 = scalar_select %p289, %s288, 0
          %p291 = scmp.lt.s32.totalorder %s290, 127
          %s292 = scalar_select %p291, %s290, 127
          %p293 = scmp.lt.s32.totalorder %s292, 0
          %s294 = ssub.s32 0, %s292
          %s295 = scalar_select %p293, %s294, %s292
          %s296 = sshrl.u32 %s295, 7
          %s297 = ssub.s32 0, %s296
          %s298 = scalar_select %p293, %s297, %s296
          %p299 = scmp.lt.s32.totalorder %s287, %s298
          %s300 = scalar_select %p299, %s287, %s298
          %p301 = scmp.gt.s32.totalorder %s287, %s298
          %s302 = scalar_select %p301, %s287, %s298
          %p303 = scmp.gt.s32.totalorder %s300, %s34
          %s304 = scalar_select %p303, %s300, %s34
          %p305 = scmp.lt.s32.totalorder %s302, %s304
          %s306 = scalar_select %p305, %s302, %s304
          %s307 = smul.u32 16, %s306
          %s309 = ssub.s32 1024, 1024
          %310 = vsyncadd %s273, %s309
          %s311 = smul.addr %s307, 64
          %s312 = scalar_lea.hbm %s4, %s311
          %s313 = sshll.u32 %s276, 4
          %s314 = int_to_ptr.vmem [resolvable:$true] %s313
          %319 = dma.hbm_to_vmem [thread:$0]  %s312, 1024, %s314, %s273, 64, 64, 4
        $region32: #{run.3} parent=19 // pred_fallthru
          _
      $region20: #{run.3} parent=5 // pred_fallthru
        _
      %p320 = scmp.le.s32.totalorder 1, %s26
      %p321 = scmp.lt.s32.totalorder %s26, 3
      %p322 = pnand %p320, %p321
      %p323 = pneg %p322
      // Predicated region
      $region33: #{run.3} parent=5 // pred_check
        _
      $region34: #{run.3} parent=5 // pred_check_branch
        %325 = sbr.rel (%p322) target = $region36
      $region35: #{run.3} parent=5 // pred_region
        %s326 = ssub.s32 %s26, 1
        %s327 = sand.u32 %s163, 1
        %s328 = scalar_lea.sflag [#allocation7], %s327
        %s329 = sand.u32 %s163, 1
        %s330 = smul.addr %s329, 64
        %s331 = scalar_lea.vmem [#allocation6], %s330
        // Predicated region
        $region37: #{run.3} parent=35 // pred_check
          %p332 = pneg %p176
        $region38: #{run.3} parent=35 // pred_check_branch
          %334 = sbr.rel (%p332) target = $region40
        $region39: #{run.3} parent=35 // pred_region
          %335 = dma.done %s328, 1024
        $region40: #{run.3} parent=35 // pred_fallthru
          _
        // Predicated region
        $region41: #{run.3} parent=35 // pred_check
          %p336 = pneg %p197
        $region42: #{run.3} parent=35 // pred_check_branch
          %338 = sbr.rel (%p336) target = $region44
        $region43: #{run.3} parent=35 // pred_region
          %339 = dma.done [#allocation9], 1024
        $region44: #{run.3} parent=35 // pred_fallthru
          _
        %p340 = scmp.lt.s32.totalorder %s35, 1
        %s341 = scalar_select %p340, %s35, 1
        %s342 = smul.addr %s341, 8
        %s343 = scalar_lea.vmem %s2, %s342
        %p344 = pneg %p64
        %p345 = pneg %p61
        %p346 = scmp.lt.s32.totalorder %s35, 1
        %s347 = scalar_select %p346, %s35, 1
        %s348 = smul.addr %s347, 8
        %s349 = scalar_lea.vmem %s3, %s348
        %p350 = pneg %p90
        %p351 = pneg %p87
        %s352 = sand.u32 %s163, 1
        %s353 = scalar_lea.sflag [#allocation7], %s352
        %s354 = sand.u32 %s163, 1
        %s355 = smul.addr %s354, 64
        %s356 = scalar_lea.vmem [#allocation6], %s355
        %p357 = pneg %p176
        %p358 = pneg %p173
        %p359 = pneg %p197
        %p360 = pneg %p194
        %p361 = pneg %p223
        %p362 = pneg %p220
        %p363 = scmp.lt.s32.totalorder %s35, 1
        %s364 = scalar_select %p363, %s35, 1
        %s365 = smul.addr %s364, 8
        %s366 = scalar_lea.vmem %s6, %s365
        %p367 = scmp.lt.s32.totalorder %s35, 1
        %s368 = scalar_select %p367, %s35, 1
        %s369 = smul.addr %s368, 8
        %s370 = scalar_lea.vmem %s2, %s369
        %p371 = scmp.lt.s32.totalorder %s35, 1
        %s372 = scalar_select %p371, %s35, 1
        %s373 = smul.addr %s372, 8
        %s374 = scalar_lea.vmem %s3, %s373
        %s375 = sld [smem:[#allocation4 + %s35]]
        %p376 = scmp.gt.s32.totalorder %s375, 0
        %s377 = scalar_select %p376, %s375, 0
        %p378 = scmp.lt.s32.totalorder %s377, 127
        %s379 = scalar_select %p378, %s377, 127
        %p380 = scmp.lt.s32.totalorder %s379, 0
        %s381 = ssub.s32 0, %s379
        %s382 = scalar_select %p380, %s381, %s379
        %s383 = sshrl.u32 %s382, 7
        %s384 = ssub.s32 0, %s383
        %s385 = scalar_select %p380, %s384, %s383
        %s386 = sld [smem:[#allocation5 + %s35]]
        %p387 = scmp.gt.s32.totalorder %s386, 0
        %s388 = scalar_select %p387, %s386, 0
        %p389 = scmp.lt.s32.totalorder %s388, 127
        %s390 = scalar_select %p389, %s388, 127
        %p391 = scmp.lt.s32.totalorder %s390, 0
        %s392 = ssub.s32 0, %s390
        %s393 = scalar_select %p391, %s392, %s390
        %s394 = sshrl.u32 %s393, 7
        %s395 = ssub.s32 0, %s394
        %s396 = scalar_select %p391, %s395, %s394
        %p397 = scmp.lt.s32.totalorder %s385, %s396
        %s398 = scalar_select %p397, %s385, %s396
        %p399 = scmp.gt.s32.totalorder %s385, %s396
        %s400 = scalar_select %p399, %s385, %s396
        %p401 = scmp.gt.s32.totalorder %s398, %s36
        %s402 = scalar_select %p401, %s398, %s36
        %p403 = scmp.lt.s32.totalorder %s400, %s402
        %s404 = scalar_select %p403, %s400, %s402
        %s405 = smul.u32 16, %s404
        %p406 = scmp.lt.s32.totalorder %s35, 1
        %s407 = scalar_select %p406, %s35, 1
        %s408 = smul.addr %s407, 8
        %s409 = scalar_lea.vmem %s6, %s408
        %s411 = sld [smem:[#allocation4 + %s35]]
        %s412 = sld [smem:[#allocation5 + %s35]]
        %s413 = smul.u32 %s36, 128
        %s414 = sadd.s32 %s413, 128
        %p415 = scmp.lt.s32.totalorder %s414, 128
        %s416 = scalar_select %p415, %s414, 128
        %p417 = scmp.eq.s32.totalorder %s36, 0
        // Predicated region
        $region45: #{run.3} parent=35 // pred_check
          %p418 = pneg %p417
        $region46: #{run.3} parent=35 // pred_check_branch
          %420 = sbr.rel (%p418) target = $region48
        $region47: #{run.3} parent=35 // pred_region
          %421 = vst [vmem:[#allocation2] sm:$0xff] 0.0
        $region48: #{run.3} parent=35 // pred_fallthru
          _
        %p422 = scmp.ge.s32.totalorder %s412, %s413
        %p423 = scmp.lt.s32.totalorder %s411, %s416
        %p424 = pnand %p422, %p423
        %p425 = pneg %p424
        // Predicated region
        $region49: #{run.3} parent=35 // pred_check
          _
        $region50: #{run.3} parent=35 // pred_check_branch
          %427 = sbr.rel (%p424) target = $region52
        $region51: #{run.3} parent=35 // pred_region
          %v428 = vld [vmem:[%s374] sm:$0xff]
          %v429 = vstv %s413
          %v430 = vsub.s32 %v428, %v429
          %v431 = vlaneseq
          %v432 = vand.u32 %v431, 127
          %433 = vset.pattern.permute.xlu0 0
          %434 = vperm.xlu0 %433, %v430
          %v435 = vpop.permute.xlu0 %434
          %vm436 = vcmp.eq.s32.totalorder %v435, %v432
          %v437 = vsel %vm436, 1, 0
          %v438 = vcvt.s32.f32 %v437
          %v439 = vpack.c.bf16 %v438, %v438
          %v440 = vld [vmem:[#allocation2] sm:$0xff]
          %v441 = vld [vmem:[%s331] sm:$0xf]
          %v442 = vld [vmem:[%s331 + $0x4] sm:$0xf]
          %v443 = vld [vmem:[%s331 + $0x8] sm:$0xf]
          %v444 = vld [vmem:[%s331 + $0xc] sm:$0xf]
          %v445 = vld [vmem:[%s331 + $0x10] sm:$0xf]
          %v446 = vld [vmem:[%s331 + $0x14] sm:$0xf]
          %v447 = vld [vmem:[%s331 + $0x18] sm:$0xf]
          %v448 = vld [vmem:[%s331 + $0x1c] sm:$0xf]
          %v449 = vld [vmem:[%s331 + $0x20] sm:$0xf]
          %v450 = vld [vmem:[%s331 + $0x24] sm:$0xf]
          %v451 = vld [vmem:[%s331 + $0x28] sm:$0xf]
          %v452 = vld [vmem:[%s331 + $0x2c] sm:$0xf]
          %v453 = vld [vmem:[%s331 + $0x30] sm:$0xf]
          %v454 = vld [vmem:[%s331 + $0x34] sm:$0xf]
          %v455 = vld [vmem:[%s331 + $0x38] sm:$0xf]
          %v456 = vld [vmem:[%s331 + $0x3c] sm:$0xf]
          %v473 = vunpack.c.l.b16 %v441
          %v474 = vunpack.c.l.b16 %v442
          %v475 = vunpack.c.l.b16 %v443
          %v476 = vunpack.c.l.b16 %v444
          %v477 = vunpack.c.l.b16 %v445
          %v478 = vunpack.c.l.b16 %v446
          %v479 = vunpack.c.l.b16 %v447
          %v480 = vunpack.c.l.b16 %v448
          %v481 = vunpack.c.l.b16 %v449
          %v482 = vunpack.c.l.b16 %v450
          %v483 = vunpack.c.l.b16 %v451
          %v484 = vunpack.c.l.b16 %v452
          %v485 = vunpack.c.l.b16 %v453
          %v486 = vunpack.c.l.b16 %v454
          %v487 = vunpack.c.l.b16 %v455
          %v488 = vunpack.c.l.b16 %v456
          %v489 = vpack.c.b16 %v474, %v473
          %v490 = vpack.c.b16 %v476, %v475
          %v491 = vpack.c.b16 %v478, %v477
          %v492 = vpack.c.b16 %v480, %v479
          %v493 = vpack.c.b16 %v482, %v481
          %v494 = vpack.c.b16 %v484, %v483
          %v495 = vpack.c.b16 %v486, %v485
          %v496 = vpack.c.b16 %v488, %v487
          %505 = vmatprep.subr.bf16.mxu0 0
          %506 = vmatpush1.bf16.msra.mxu0 %v489
          %507 = vmatprep.subr.bf16.mxu0 0
          %508 = vmatpush1.bf16.msra.mxu0 %v490
          %509 = vmatprep.subr.bf16.mxu0 0
          %510 = vmatpush1.bf16.msra.mxu0 %v491
          %511 = vmatprep.subr.bf16.mxu0 0
          %512 = vmatpush1.bf16.msra.mxu0 %v492
          %513 = vmatprep.subr.bf16.mxu0 0
          %514 = vmatpush1.bf16.msra.mxu0 %v493
          %515 = vmatprep.subr.bf16.mxu0 0
          %516 = vmatpush1.bf16.msra.mxu0 %v494
          %517 = vmatprep.subr.bf16.mxu0 0
          %518 = vmatpush1.bf16.msra.mxu0 %v495
          %519 = vmatprep.subr.bf16.mxu0 0
          %520 = vmatpush1.bf16.msra.mxu0 %v496
          %521 = vmatprep.subr.bf16.mxu0 0
          %522 = vmatpush1.bf16.msra.mxu0 0
          %523 = vmatprep.subr.bf16.mxu0 0
          %524 = vmatpush1.bf16.msra.mxu0 0
          %525 = vmatprep.subr.bf16.mxu0 0
          %526 = vmatpush1.bf16.msra.mxu0 0
          %527 = vmatprep.subr.bf16.mxu0 0
          %528 = vmatpush1.bf16.msra.mxu0 0
          %529 = vmatprep.subr.bf16.mxu0 0
          %530 = vmatpush1.bf16.msra.mxu0 0
          %531 = vmatprep.subr.bf16.mxu0 0
          %532 = vmatpush1.bf16.msra.mxu0 0
          %533 = vmatprep.subr.bf16.mxu0 0
          %534 = vmatpush1.bf16.msra.mxu0 0
          %535 = vmatprep.subr.bf16.mxu0 0
          %536 = vmatpush1.bf16.msra.mxu0 0
          %537 = vmatprep.mubr.bf16.mxu0 0
          %538 = vmatmul.mubr.bf16.gmra.mrb[0].mxu0 %v439
          %v539 = vpop.f32.mrb[0].mxu0
          %v540 = vadd.f32 0.0, %v539
          %v541 = vpop.f32.mrb[0].mxu0
          %v542 = vpop.f32.mrb[0].mxu0
          %v543 = vpop.f32.mrb[0].mxu0
          %544 = vdwg.mxu0
          %v545 = vadd.f32 %v440, %v540
          %546 = vst [vmem:[#allocation2] sm:$0xff] %v545
        $region52: #{run.3} parent=35 // pred_fallthru
          _
        %p547 = scmp.ge.s32.totalorder %s412, 0
        %p548 = scmp.lt.s32.totalorder %s411, 128
        %p549 = pnand %p547, %p548
        %p550 = pneg %p549
        %p551 = pnand %p417, %p550
        %p552 = pneg %p551
        // Predicated region
        $region53: #{run.3} parent=35 // pred_check
          _
        $region54: #{run.3} parent=35 // pred_check_branch
          %554 = sbr.rel (%p551) target = $region56
        $region55: #{run.3} parent=35 // pred_region
          %v555 = vld [vmem:[%s370] sm:$0xff]
          %v556 = vld [vmem:[#allocation2] sm:$0xff]
          %v557 = vpack.c.bf16 %v556, %v556
          %v558 = vld [vmem:[#allocation8] sm:$0xf]
          %v559 = vld [vmem:[#allocation8 + $0x4] sm:$0xf]
          %v560 = vld [vmem:[#allocation8 + $0x8] sm:$0xf]
          %v561 = vld [vmem:[#allocation8 + $0xc] sm:$0xf]
          %v562 = vld [vmem:[#allocation8 + $0x10] sm:$0xf]
          %v563 = vld [vmem:[#allocation8 + $0x14] sm:$0xf]
          %v564 = vld [vmem:[#allocation8 + $0x18] sm:$0xf]
          %v565 = vld [vmem:[#allocation8 + $0x1c] sm:$0xf]
          %v566 = vld [vmem:[#allocation8 + $0x20] sm:$0xf]
          %v567 = vld [vmem:[#allocation8 + $0x24] sm:$0xf]
          %v568 = vld [vmem:[#allocation8 + $0x28] sm:$0xf]
          %v569 = vld [vmem:[#allocation8 + $0x2c] sm:$0xf]
          %v570 = vld [vmem:[#allocation8 + $0x30] sm:$0xf]
          %v571 = vld [vmem:[#allocation8 + $0x34] sm:$0xf]
          %v572 = vld [vmem:[#allocation8 + $0x38] sm:$0xf]
          %v573 = vld [vmem:[#allocation8 + $0x3c] sm:$0xf]
          %v590 = vunpack.c.l.b16 %v558
          %v591 = vunpack.c.l.b16 %v559
          %v592 = vunpack.c.l.b16 %v560
          %v593 = vunpack.c.l.b16 %v561
          %v594 = vunpack.c.l.b16 %v562
          %v595 = vunpack.c.l.b16 %v563
          %v596 = vunpack.c.l.b16 %v564
          %v597 = vunpack.c.l.b16 %v565
          %v598 = vunpack.c.l.b16 %v566
          %v599 = vunpack.c.l.b16 %v567
          %v600 = vunpack.c.l.b16 %v568
          %v601 = vunpack.c.l.b16 %v569
          %v602 = vunpack.c.l.b16 %v570
          %v603 = vunpack.c.l.b16 %v571
          %v604 = vunpack.c.l.b16 %v572
          %v605 = vunpack.c.l.b16 %v573
          %v606 = vpack.c.b16 %v591, %v590
          %v607 = vpack.c.b16 %v593, %v592
          %v608 = vpack.c.b16 %v595, %v594
          %v609 = vpack.c.b16 %v597, %v596
          %v610 = vpack.c.b16 %v599, %v598
          %v611 = vpack.c.b16 %v601, %v600
          %v612 = vpack.c.b16 %v603, %v602
          %v613 = vpack.c.b16 %v605, %v604
          %622 = vmatprep.subr.bf16.mxu0 0
          %623 = vmatpush1.bf16.msra.mxu0 %v606
          %624 = vmatprep.subr.bf16.mxu0 0
          %625 = vmatpush1.bf16.msra.mxu0 %v607
          %626 = vmatprep.subr.bf16.mxu0 0
          %627 = vmatpush1.bf16.msra.mxu0 %v608
          %628 = vmatprep.subr.bf16.mxu0 0
          %629 = vmatpush1.bf16.msra.mxu0 %v609
          %630 = vmatprep.subr.bf16.mxu0 0
          %631 = vmatpush1.bf16.msra.mxu0 %v610
          %632 = vmatprep.subr.bf16.mxu0 0
          %633 = vmatpush1.bf16.msra.mxu0 %v611
          %634 = vmatprep.subr.bf16.mxu0 0
          %635 = vmatpush1.bf16.msra.mxu0 %v612
          %636 = vmatprep.subr.bf16.mxu0 0
          %637 = vmatpush1.bf16.msra.mxu0 %v613
          %638 = vmatprep.subr.bf16.mxu0 0
          %639 = vmatpush1.bf16.msra.mxu0 0
          %640 = vmatprep.subr.bf16.mxu0 0
          %641 = vmatpush1.bf16.msra.mxu0 0
          %642 = vmatprep.subr.bf16.mxu0 0
          %643 = vmatpush1.bf16.msra.mxu0 0
          %644 = vmatprep.subr.bf16.mxu0 0
          %645 = vmatpush1.bf16.msra.mxu0 0
          %646 = vmatprep.subr.bf16.mxu0 0
          %647 = vmatpush1.bf16.msra.mxu0 0
          %648 = vmatprep.subr.bf16.mxu0 0
          %649 = vmatpush1.bf16.msra.mxu0 0
          %650 = vmatprep.subr.bf16.mxu0 0
          %651 = vmatpush1.bf16.msra.mxu0 0
          %652 = vmatprep.subr.bf16.mxu0 0
          %653 = vmatpush1.bf16.msra.mxu0 0
          %654 = vmatprep.mubr.bf16.mxu0 0
          %655 = vmatmul.mubr.bf16.gmra.mrb[0].mxu0 %v557
          %v656 = vpop.f32.mrb[0].mxu0
          %v657 = vadd.f32 0.0, %v656
          %v658 = vpop.f32.mrb[0].mxu0
          %v659 = vpop.f32.mrb[0].mxu0
          %v660 = vpop.f32.mrb[0].mxu0
          %661 = vdwg.mxu0
          %v662 = vadd.f32 %v555, %v657
          %663 = vst [vmem:[%s409] sm:$0xff] %v662
        $region56: #{run.3} parent=35 // pred_fallthru
          _
        %p664 = pneg %p550
        %p665 = pnand %p417, %p664
        %p666 = pneg %p665
        // Predicated region
        $region57: #{run.3} parent=35 // pred_check
          _
        $region58: #{run.3} parent=35 // pred_check_branch
          %668 = sbr.rel (%p665) target = $region60
        $region59: #{run.3} parent=35 // pred_region
          %v669 = vld [vmem:[%s370] sm:$0xff]
          %670 = vst [vmem:[%s409] sm:$0xff] %v669
        $region60: #{run.3} parent=35 // pred_fallthru
          _
        %p671 = scmp.lt.s32.totalorder %s35, 1
        %s672 = scalar_select %p671, %s35, 1
        %s673 = smul.addr %s672, 8
        %s674 = scalar_lea.vmem %s6, %s673
        // Predicated region
        $region61: #{run.3} parent=35 // pred_check
          %p675 = pneg %p220
        $region62: #{run.3} parent=35 // pred_check_branch
          %677 = sbr.rel (%p675) target = $region64
        $region63: #{run.3} parent=35 // pred_region
          _
        $region64: #{run.3} parent=35 // pred_fallthru
          _
      $region36: #{run.3} parent=5 // pred_fallthru
        _
      %p678 = scmp.le.s32.totalorder 2, %s26
      // Predicated region
      $region65: #{run.3} parent=5 // pred_check
        %p679 = pneg %p678
      $region66: #{run.3} parent=5 // pred_check_branch
        %681 = sbr.rel (%p679) target = $region68
      $region67: #{run.3} parent=5 // pred_region
        %s682 = ssub.s32 %s26, 2
        // Predicated region
        $region69: #{run.3} parent=67 // pred_check
          %p683 = pneg %p226
        $region70: #{run.3} parent=67 // pred_check_branch
          %685 = sbr.rel (%p683) target = $region72
        $region71: #{run.3} parent=67 // pred_region
          %p686 = scmp.lt.s32.totalorder %s37, 1
          %s687 = scalar_select %p686, %s37, 1
          %s688 = smul.addr %s687, 8
          %s689 = scalar_lea.vmem %s6, %s688
        $region72: #{run.3} parent=67 // pred_fallthru
          _
      $region68: #{run.3} parent=5 // pred_fallthru
        _
    $region6: #{run.3} parent=1 // loop_footer
      %s30 = sadd.s32 1, %s26
    $region7: #{run.3} parent=1 // loop_footer_branch
      %25 = sbr.rel target = $region3
    $region8: #{run.3} parent=1 // loop_exit
      _
    %690 = vsyncpa [#allocation7], 1
    %s691 = scalar_lea.sflag [#allocation7], 1
    %692 = vsyncpa %s691, 1
    %693 = vsyncpa [#allocation9], 1

// kernel: run.4
$region0: #{run.4}
  #allocation0 [shape = 'u32[]', space=smem, size = 0x4, offset = 0x4, fixed_abs, tag = 'smem constant byte address 0x4 - core index']
  #allocation1 [shape = 'u32[144,128]{1,0:T(1,128)}', space=vmem, size = 0x12000, scoped, tag = 'internal scratch']
  #allocation2 [shape = 'f32[8,128]{1,0:T(8,128)}', space=vmem, size = 0x1000, scoped, tag = 'scratch operand']
  #allocation3 [shape = 's32[1]{0}', space=sflag, size = 0x4, scoped, tag = 'scoped memory for run.4']
  #allocation4 [shape = 'u8[512]{0}', space=smem, size = 0x200, scoped, tag = 'prefetched SMEM operand 0']
  #allocation5 [shape = 'u8[512]{0}', space=smem, size = 0x200, scoped, tag = 'prefetched SMEM operand 1']
  %s0 = inlined_call_operand.vmem [shape: s32[2], index: 0, kind: input, shape index: {}]
  %s1 = inlined_call_operand.vmem [shape: s32[2], index: 1, kind: input, shape index: {}]
  %s2 = inlined_call_operand.vmem [shape: f32[16,128], index: 2, kind: input, shape index: {}, may-alias: {2,6}]
  %s3 = inlined_call_operand.vmem [shape: s32[16,1], index: 3, kind: input, shape index: {}]
  %s4 = inlined_call_operand.vmem [shape: bf16[128,128], index: 4, kind: input, shape index: {}]
  %s5 = inlined_call_operand.vmem [shape: bf16[128,128], index: 5, kind: input, shape index: {}]
  %s6 = inlined_call_operand.vmem [shape: f32[16,128], index: 6, kind: output, shape index: {}, may-alias: {2,6}]
  %s7 = sld [smem:[#allocation0]]
  $region65: #{run.4} parent=0
    _
  %s9 = ssub.s32 1, %s7
  %s10 = scalar_select 0, %s9, %s7
  %s11 = sshll.u32 %s0, 4
  %s12 = int_to_ptr.vmem [resolvable:$true] %s11
  %14 = dma.vmem_to_smem %s12, 16, [#allocation4], [#allocation3]
  %s15 = sshll.u32 %s1, 4
  %s16 = int_to_ptr.vmem [resolvable:$true] %s15
  %18 = dma.vmem_to_smem %s16, 16, [#allocation5], [#allocation3]
  %19 = dma.done [#allocation3], 32
  %20 = sfence
  loop: start=0, step=1, limit=4
  $region2: #{run.4} parent=0 // loop_pre_header
    _
  $region3: #{run.4} parent=0 // loop_header
    %s22 = sphi 0, %s26
    %p23 = scmp.ge.s32.totalorder %s22, 4
    %s29 = sphi 0, %s41
    %s30 = sphi 0, %s37
    %s31 = sphi 0, %s29
    %s32 = sphi 0, %s30
    %s33 = sphi 0, %s31
    %s34 = sphi 0, %s32
    %s44 = sphi 0, %s46
    %s47 = sphi 0, %s44
    %s48 = sphi 0, %s47
    %s64 = sphi 0, %s48
    %s70 = sphi 0, %s72
    %s73 = sphi 0, %s70
    %s74 = sphi 0, %s73
    %s90 = sphi 0, %s74
    %s160 = sphi 0, %s162
    %s163 = sphi 0, %s160
    %s164 = sphi 0, %s163
    %s180 = sphi 0, %s164
    %s184 = sphi 0, %s184
    %s186 = sphi 0, %s184
    %s187 = sphi 0, %s186
    %s201 = sphi 0, %s187
    %s207 = sphi 0, %s209
    %s210 = sphi 0, %s207
    %s211 = sphi 0, %s210
    %s227 = sphi 0, %s211
  $region4: #{run.4} parent=0 // loop_header_branch
    %25 = sbr.rel (%p23) target = $region8
  $region5: #{run.4} parent=0 // loop_body
    %s27 = ssub.s32 %s22, 1
    %s28 = ssub.s32 %s22, 2
    %s35 = sadd.s32 1, %s30
    %p36 = scmp.ge.s32.totalorder %s35, 1
    %s37 = scalar_select %p36, 0, %s35
    %s38 = sadd.s32 1, %s29
    %s39 = scalar_select %p36, %s38, %s29
    %p40 = scmp.ge.s32.totalorder %s39, 2
    %s41 = scalar_select %p40, 0, %s39
    %s42 = ssub.s32 %s29, %s41
    %p43 = scmp.eq.s32.totalorder %s42, 0
    %s45 = sadd.s32 %s44, 1
    %s46 = scalar_select %p43, %s44, %s45
    %p49 = pneg %p43
    %p50 = scmp.eq.s32.totalorder %s22, 1
    %p51 = por %p49, %p50
    %p52 = scmp.ne.s32.totalorder %s44, %s47
    %p53 = scmp.eq.s32.totalorder %s22, 0
    %p54 = por %p52, %p53
    %p55 = scmp.ne.s32.totalorder %s44, %s47
    %p56 = scmp.eq.s32.totalorder %s27, 1
    %p57 = por %p55, %p56
    %p58 = scmp.ne.s32.totalorder %s47, %s48
    %p59 = scmp.eq.s32.totalorder %s27, 0
    %p60 = por %p58, %p59
    %p61 = scmp.ne.s32.totalorder %s47, %s48
    %p62 = scmp.eq.s32.totalorder %s28, 1
    %p63 = por %p61, %p62
    %p65 = scmp.ne.s32.totalorder %s48, %s64
    %p66 = scmp.eq.s32.totalorder %s28, 0
    %p67 = por %p65, %p66
    %s68 = ssub.s32 %s29, %s41
    %p69 = scmp.eq.s32.totalorder %s68, 0
    %s71 = sadd.s32 %s70, 1
    %s72 = scalar_select %p69, %s70, %s71
    %p75 = pneg %p69
    %p76 = scmp.eq.s32.totalorder %s22, 1
    %p77 = por %p75, %p76
    %p78 = scmp.ne.s32.totalorder %s70, %s73
    %p79 = scmp.eq.s32.totalorder %s22, 0
    %p80 = por %p78, %p79
    %p81 = scmp.ne.s32.totalorder %s70, %s73
    %p82 = scmp.eq.s32.totalorder %s27, 1
    %p83 = por %p81, %p82
    %p84 = scmp.ne.s32.totalorder %s73, %s74
    %p85 = scmp.eq.s32.totalorder %s27, 0
    %p86 = por %p84, %p85
    %p87 = scmp.ne.s32.totalorder %s73, %s74
    %p88 = scmp.eq.s32.totalorder %s28, 1
    %p89 = por %p87, %p88
    %p91 = scmp.ne.s32.totalorder %s74, %s90
    %p92 = scmp.eq.s32.totalorder %s28, 0
    %p93 = por %p91, %p92
    %s94 = sld [smem:[#allocation4 + %s29]]
    %s95 = ssub.s32 %s94, 128
    %p96 = scmp.gt.s32.totalorder %s95, 0
    %s97 = scalar_select %p96, %s95, 0
    %p98 = scmp.lt.s32.totalorder %s97, 127
    %s99 = scalar_select %p98, %s97, 127
    %p100 = scmp.lt.s32.totalorder %s99, 0
    %s101 = ssub.s32 0, %s99
    %s102 = scalar_select %p100, %s101, %s99
    %s103 = sshrl.u32 %s102, 7
    %s104 = ssub.s32 0, %s103
    %s105 = scalar_select %p100, %s104, %s103
    %s106 = sld [smem:[#allocation5 + %s29]]
    %s107 = ssub.s32 %s106, 128
    %p108 = scmp.gt.s32.totalorder %s107, 0
    %s109 = scalar_select %p108, %s107, 0
    %p110 = scmp.lt.s32.totalorder %s109, 127
    %s111 = scalar_select %p110, %s109, 127
    %p112 = scmp.lt.s32.totalorder %s111, 0
    %s113 = ssub.s32 0, %s111
    %s114 = scalar_select %p112, %s113, %s111
    %s115 = sshrl.u32 %s114, 7
    %s116 = ssub.s32 0, %s115
    %s117 = scalar_select %p112, %s116, %s115
    %p118 = scmp.lt.s32.totalorder %s105, %s117
    %s119 = scalar_select %p118, %s105, %s117
    %p120 = scmp.gt.s32.totalorder %s105, %s117
    %s121 = scalar_select %p120, %s105, %s117
    %p122 = scmp.gt.s32.totalorder %s119, %s30
    %s123 = scalar_select %p122, %s119, %s30
    %p124 = scmp.lt.s32.totalorder %s121, %s123
    %s125 = scalar_select %p124, %s121, %s123
    %s126 = sld [smem:[#allocation4 + %s41]]
    %s127 = ssub.s32 %s126, 128
    %p128 = scmp.gt.s32.totalorder %s127, 0
    %s129 = scalar_select %p128, %s127, 0
    %p130 = scmp.lt.s32.totalorder %s129, 127
    %s131 = scalar_select %p130, %s129, 127
    %p132 = scmp.lt.s32.totalorder %s131, 0
    %s133 = ssub.s32 0, %s131
    %s134 = scalar_select %p132, %s133, %s131
    %s135 = sshrl.u32 %s134, 7
    %s136 = ssub.s32 0, %s135
    %s137 = scalar_select %p132, %s136, %s135
    %s138 = sld [smem:[#allocation5 + %s41]]
    %s139 = ssub.s32 %s138, 128
    %p140 = scmp.gt.s32.totalorder %s139, 0
    %s141 = scalar_select %p140, %s139, 0
    %p142 = scmp.lt.s32.totalorder %s141, 127
    %s143 = scalar_select %p142, %s141, 127
    %p144 = scmp.lt.s32.totalorder %s143, 0
    %s145 = ssub.s32 0, %s143
    %s146 = scalar_select %p144, %s145, %s143
    %s147 = sshrl.u32 %s146, 7
    %s148 = ssub.s32 0, %s147
    %s149 = scalar_select %p144, %s148, %s147
    %p150 = scmp.lt.s32.totalorder %s137, %s149
    %s151 = scalar_select %p150, %s137, %s149
    %p152 = scmp.gt.s32.totalorder %s137, %s149
    %s153 = scalar_select %p152, %s137, %s149
    %p154 = scmp.gt.s32.totalorder %s151, %s37
    %s155 = scalar_select %p154, %s151, %s37
    %p156 = scmp.lt.s32.totalorder %s153, %s155
    %s157 = scalar_select %p156, %s153, %s155
    %s158 = ssub.s32 %s125, %s157
    %p159 = scmp.eq.s32.totalorder %s158, 0
    %s161 = sadd.s32 %s160, 1
    %s162 = scalar_select %p159, %s160, %s161
    %p165 = pneg %p159
    %p166 = scmp.eq.s32.totalorder %s22, 1
    %p167 = por %p165, %p166
    %p168 = scmp.ne.s32.totalorder %s160, %s163
    %p169 = scmp.eq.s32.totalorder %s22, 0
    %p170 = por %p168, %p169
    %p171 = scmp.ne.s32.totalorder %s160, %s163
    %p172 = scmp.eq.s32.totalorder %s27, 1
    %p173 = por %p171, %p172
    %p174 = scmp.ne.s32.totalorder %s163, %s164
    %p175 = scmp.eq.s32.totalorder %s27, 0
    %p176 = por %p174, %p175
    %p177 = scmp.ne.s32.totalorder %s163, %s164
    %p178 = scmp.eq.s32.totalorder %s28, 1
    %p179 = por %p177, %p178
    %p181 = scmp.ne.s32.totalorder %s164, %s180
    %p182 = scmp.eq.s32.totalorder %s28, 0
    %p183 = por %p181, %p182
    %s185 = sadd.s32 %s184, 1
    %p188 = scmp.eq.s32.totalorder %s22, 1
    %p189 = scmp.ne.s32.totalorder %s184, %s186
    %p190 = scmp.eq.s32.totalorder %s22, 0
    %p191 = por %p189, %p190
    %p192 = scmp.ne.s32.totalorder %s184, %s186
    %p193 = scmp.eq.s32.totalorder %s27, 1
    %p194 = por %p192, %p193
    %p195 = scmp.ne.s32.totalorder %s186, %s187
    %p196 = scmp.eq.s32.totalorder %s27, 0
    %p197 = por %p195, %p196
    %p198 = scmp.ne.s32.totalorder %s186, %s187
    %p199 = scmp.eq.s32.totalorder %s28, 1
    %p200 = por %p198, %p199
    %p202 = scmp.ne.s32.totalorder %s187, %s201
    %p203 = scmp.eq.s32.totalorder %s28, 0
    %p204 = por %p202, %p203
    %s205 = ssub.s32 %s29, %s41
    %p206 = scmp.eq.s32.totalorder %s205, 0
    %s208 = sadd.s32 %s207, 1
    %s209 = scalar_select %p206, %s207, %s208
    %p212 = pneg %p206
    %p213 = scmp.eq.s32.totalorder %s22, 1
    %p214 = por %p212, %p213
    %p215 = scmp.ne.s32.totalorder %s207, %s210
    %p216 = scmp.eq.s32.totalorder %s22, 0
    %p217 = por %p215, %p216
    %p218 = scmp.ne.s32.totalorder %s207, %s210
    %p219 = scmp.eq.s32.totalorder %s27, 1
    %p220 = por %p218, %p219
    %p221 = scmp.ne.s32.totalorder %s210, %s211
    %p222 = scmp.eq.s32.totalorder %s27, 0
    %p223 = por %p221, %p222
    %p224 = scmp.ne.s32.totalorder %s210, %s211
    %p225 = scmp.eq.s32.totalorder %s28, 1
    %p226 = por %p224, %p225
    %p228 = scmp.ne.s32.totalorder %s211, %s227
    %p229 = scmp.eq.s32.totalorder %s28, 0
    %p230 = por %p228, %p229
    %p231 = scmp.le.s32.totalorder 1, %s22
    %p232 = scmp.lt.s32.totalorder %s22, 3
    %p233 = pnand %p231, %p232
    %p234 = pneg %p233
    // Predicated region
    $region9: #{run.4} parent=5 // pred_check
      _
    $region10: #{run.4} parent=5 // pred_check_branch
      %236 = sbr.rel (%p233) target = $region12
    $region11: #{run.4} parent=5 // pred_region
      %s237 = ssub.s32 %s22, 1
      // Predicated region
      $region13: #{run.4} parent=11 // pred_check
        %p238 = pneg %p197
      $region14: #{run.4} parent=11 // pred_check_branch
        %240 = sbr.rel (%p238) target = $region16
      $region15: #{run.4} parent=11 // pred_region
        _
      $region16: #{run.4} parent=11 // pred_fallthru
        _
    $region12: #{run.4} parent=5 // pred_fallthru
      _
    %p241 = scmp.lt.s32.totalorder %s22, 2
    // Predicated region
    $region17: #{run.4} parent=5 // pred_check
      %p242 = pneg %p241
    $region18: #{run.4} parent=5 // pred_check_branch
      %244 = sbr.rel (%p242) target = $region20
    $region19: #{run.4} parent=5 // pred_region
      // Predicated region
      $region21: #{run.4} parent=19 // pred_check
        %p245 = pneg %p54
      $region22: #{run.4} parent=19 // pred_check_branch
        %247 = sbr.rel (%p245) target = $region24
      $region23: #{run.4} parent=19 // pred_region
        %p248 = scmp.lt.s32.totalorder %s29, 1
        %s249 = scalar_select %p248, %s29, 1
        %s250 = smul.addr %s249, 8
        %s251 = scalar_lea.vmem %s2, %s250
      $region24: #{run.4} parent=19 // pred_fallthru
        _
      // Predicated region
      $region25: #{run.4} parent=19 // pred_check
        %p252 = pneg %p80
      $region26: #{run.4} parent=19 // pred_check_branch
        %254 = sbr.rel (%p252) target = $region28
      $region27: #{run.4} parent=19 // pred_region
        %p255 = scmp.lt.s32.totalorder %s29, 1
        %s256 = scalar_select %p255, %s29, 1
        %s257 = smul.addr %s256, 8
        %s258 = scalar_lea.vmem %s3, %s257
      $region28: #{run.4} parent=19 // pred_fallthru
        _
      // Predicated region
      $region29: #{run.4} parent=19 // pred_check
        %p259 = pneg %p170
      $region30: #{run.4} parent=19 // pred_check_branch
        %261 = sbr.rel (%p259) target = $region32
      $region31: #{run.4} parent=19 // pred_region
        %s262 = sld [smem:[#allocation4 + %s29]]
        %s263 = ssub.s32 %s262, 128
        %p264 = scmp.gt.s32.totalorder %s263, 0
        %s265 = scalar_select %p264, %s263, 0
        %p266 = scmp.lt.s32.totalorder %s265, 127
        %s267 = scalar_select %p266, %s265, 127
        %p268 = scmp.lt.s32.totalorder %s267, 0
        %s269 = ssub.s32 0, %s267
        %s270 = scalar_select %p268, %s269, %s267
        %s271 = sshrl.u32 %s270, 7
        %s272 = ssub.s32 0, %s271
        %s273 = scalar_select %p268, %s272, %s271
        %s274 = sld [smem:[#allocation5 + %s29]]
        %s275 = ssub.s32 %s274, 128
        %p276 = scmp.gt.s32.totalorder %s275, 0
        %s277 = scalar_select %p276, %s275, 0
        %p278 = scmp.lt.s32.totalorder %s277, 127
        %s279 = scalar_select %p278, %s277, 127
        %p280 = scmp.lt.s32.totalorder %s279, 0
        %s281 = ssub.s32 0, %s279
        %s282 = scalar_select %p280, %s281, %s279
        %s283 = sshrl.u32 %s282, 7
        %s284 = ssub.s32 0, %s283
        %s285 = scalar_select %p280, %s284, %s283
        %p286 = scmp.lt.s32.totalorder %s273, %s285
        %s287 = scalar_select %p286, %s273, %s285
        %p288 = scmp.gt.s32.totalorder %s273, %s285
        %s289 = scalar_select %p288, %s273, %s285
        %p290 = scmp.gt.s32.totalorder %s287, %s30
        %s291 = scalar_select %p290, %s287, %s30
        %p292 = scmp.lt.s32.totalorder %s289, %s291
        %s293 = scalar_select %p292, %s289, %s291
        %s294 = smul.u32 16, %s293
        %p295 = scmp.lt.s32.totalorder %s294, 15
        %s296 = scalar_select %p295, %s294, 15
        %s297 = smul.addr %s296, 4
        %s298 = scalar_lea.vmem %s4, %s297
        %s299 = sld [smem:[#allocation4 + %s29]]
        %s300 = ssub.s32 %s299, 128
        %p301 = scmp.gt.s32.totalorder %s300, 0
        %s302 = scalar_select %p301, %s300, 0
        %p303 = scmp.lt.s32.totalorder %s302, 127
        %s304 = scalar_select %p303, %s302, 127
        %p305 = scmp.lt.s32.totalorder %s304, 0
        %s306 = ssub.s32 0, %s304
        %s307 = scalar_select %p305, %s306, %s304
        %s308 = sshrl.u32 %s307, 7
        %s309 = ssub.s32 0, %s308
        %s310 = scalar_select %p305, %s309, %s308
        %s311 = sld [smem:[#allocation5 + %s29]]
        %s312 = ssub.s32 %s311, 128
        %p313 = scmp.gt.s32.totalorder %s312, 0
        %s314 = scalar_select %p313, %s312, 0
        %p315 = scmp.lt.s32.totalorder %s314, 127
        %s316 = scalar_select %p315, %s314, 127
        %p317 = scmp.lt.s32.totalorder %s316, 0
        %s318 = ssub.s32 0, %s316
        %s319 = scalar_select %p317, %s318, %s316
        %s320 = sshrl.u32 %s319, 7
        %s321 = ssub.s32 0, %s320
        %s322 = scalar_select %p317, %s321, %s320
        %p323 = scmp.lt.s32.totalorder %s310, %s322
        %s324 = scalar_select %p323, %s310, %s322
        %p325 = scmp.gt.s32.totalorder %s310, %s322
        %s326 = scalar_select %p325, %s310, %s322
        %p327 = scmp.gt.s32.totalorder %s324, %s30
        %s328 = scalar_select %p327, %s324, %s30
        %p329 = scmp.lt.s32.totalorder %s326, %s328
        %s330 = scalar_select %p329, %s326, %s328
        %s331 = smul.u32 16, %s330
      $region32: #{run.4} parent=19 // pred_fallthru
        _
    $region20: #{run.4} parent=5 // pred_fallthru
      _
    %p332 = scmp.le.s32.totalorder 1, %s22
    %p333 = scmp.lt.s32.totalorder %s22, 3
    %p334 = pnand %p332, %p333
    %p335 = pneg %p334
    // Predicated region
    $region33: #{run.4} parent=5 // pred_check
      _
    $region34: #{run.4} parent=5 // pred_check_branch
      %337 = sbr.rel (%p334) target = $region36
    $region35: #{run.4} parent=5 // pred_region
      %s338 = ssub.s32 %s22, 1
      %p339 = scmp.lt.s32.totalorder %s31, 1
      %s340 = scalar_select %p339, %s31, 1
      %s341 = smul.addr %s340, 8
      %s342 = scalar_lea.vmem %s2, %s341
      %p343 = pneg %p60
      %p344 = pneg %p57
      %p345 = scmp.lt.s32.totalorder %s31, 1
      %s346 = scalar_select %p345, %s31, 1
      %s347 = smul.addr %s346, 8
      %s348 = scalar_lea.vmem %s3, %s347
      %p349 = pneg %p86
      %p350 = pneg %p83
      %s351 = sld [smem:[#allocation4 + %s31]]
      %s352 = ssub.s32 %s351, 128
      %p353 = scmp.gt.s32.totalorder %s352, 0
      %s354 = scalar_select %p353, %s352, 0
      %p355 = scmp.lt.s32.totalorder %s354, 127
      %s356 = scalar_select %p355, %s354, 127
      %p357 = scmp.lt.s32.totalorder %s356, 0
      %s358 = ssub.s32 0, %s356
      %s359 = scalar_select %p357, %s358, %s356
      %s360 = sshrl.u32 %s359, 7
      %s361 = ssub.s32 0, %s360
      %s362 = scalar_select %p357, %s361, %s360
      %s363 = sld [smem:[#allocation5 + %s31]]
      %s364 = ssub.s32 %s363, 128
      %p365 = scmp.gt.s32.totalorder %s364, 0
      %s366 = scalar_select %p365, %s364, 0
      %p367 = scmp.lt.s32.totalorder %s366, 127
      %s368 = scalar_select %p367, %s366, 127
      %p369 = scmp.lt.s32.totalorder %s368, 0
      %s370 = ssub.s32 0, %s368
      %s371 = scalar_select %p369, %s370, %s368
      %s372 = sshrl.u32 %s371, 7
      %s373 = ssub.s32 0, %s372
      %s374 = scalar_select %p369, %s373, %s372
      %p375 = scmp.lt.s32.totalorder %s362, %s374
      %s376 = scalar_select %p375, %s362, %s374
      %p377 = scmp.gt.s32.totalorder %s362, %s374
      %s378 = scalar_select %p377, %s362, %s374
      %p379 = scmp.gt.s32.totalorder %s376, %s32
      %s380 = scalar_select %p379, %s376, %s32
      %p381 = scmp.lt.s32.totalorder %s378, %s380
      %s382 = scalar_select %p381, %s378, %s380
      %s383 = smul.u32 16, %s382
      %p384 = scmp.lt.s32.totalorder %s383, 15
      %s385 = scalar_select %p384, %s383, 15
      %s386 = smul.addr %s385, 4
      %s387 = scalar_lea.vmem %s4, %s386
      %p388 = pneg %p176
      %p389 = pneg %p173
      %p390 = pneg %p197
      %p391 = pneg %p194
      %p392 = pneg %p223
      %p393 = pneg %p220
      %p394 = scmp.lt.s32.totalorder %s31, 1
      %s395 = scalar_select %p394, %s31, 1
      %s396 = smul.addr %s395, 8
      %s397 = scalar_lea.vmem %s6, %s396
      %p398 = scmp.lt.s32.totalorder %s31, 1
      %s399 = scalar_select %p398, %s31, 1
      %s400 = smul.addr %s399, 8
      %s401 = scalar_lea.vmem %s2, %s400
      %p402 = scmp.lt.s32.totalorder %s31, 1
      %s403 = scalar_select %p402, %s31, 1
      %s404 = smul.addr %s403, 8
      %s405 = scalar_lea.vmem %s3, %s404
      %s406 = sld [smem:[#allocation4 + %s31]]
      %s407 = ssub.s32 %s406, 128
      %p408 = scmp.gt.s32.totalorder %s407, 0
      %s409 = scalar_select %p408, %s407, 0
      %p410 = scmp.lt.s32.totalorder %s409, 127
      %s411 = scalar_select %p410, %s409, 127
      %p412 = scmp.lt.s32.totalorder %s411, 0
      %s413 = ssub.s32 0, %s411
      %s414 = scalar_select %p412, %s413, %s411
      %s415 = sshrl.u32 %s414, 7
      %s416 = ssub.s32 0, %s415
      %s417 = scalar_select %p412, %s416, %s415
      %s418 = sld [smem:[#allocation5 + %s31]]
      %s419 = ssub.s32 %s418, 128
      %p420 = scmp.gt.s32.totalorder %s419, 0
      %s421 = scalar_select %p420, %s419, 0
      %p422 = scmp.lt.s32.totalorder %s421, 127
      %s423 = scalar_select %p422, %s421, 127
      %p424 = scmp.lt.s32.totalorder %s423, 0
      %s425 = ssub.s32 0, %s423
      %s426 = scalar_select %p424, %s425, %s423
      %s427 = sshrl.u32 %s426, 7
      %s428 = ssub.s32 0, %s427
      %s429 = scalar_select %p424, %s428, %s427
      %p430 = scmp.lt.s32.totalorder %s417, %s429
      %s431 = scalar_select %p430, %s417, %s429
      %p432 = scmp.gt.s32.totalorder %s417, %s429
      %s433 = scalar_select %p432, %s417, %s429
      %p434 = scmp.gt.s32.totalorder %s431, %s32
      %s435 = scalar_select %p434, %s431, %s32
      %p436 = scmp.lt.s32.totalorder %s433, %s435
      %s437 = scalar_select %p436, %s433, %s435
      %s438 = smul.u32 16, %s437
      %p439 = scmp.lt.s32.totalorder %s438, 15
      %s440 = scalar_select %p439, %s438, 15
      %s441 = smul.addr %s440, 4
      %s442 = scalar_lea.vmem %s4, %s441
      %s443 = sld [smem:[#allocation4 + %s31]]
      %s444 = ssub.s32 %s443, 128
      %p445 = scmp.gt.s32.totalorder %s444, 0
      %s446 = scalar_select %p445, %s444, 0
      %p447 = scmp.lt.s32.totalorder %s446, 127
      %s448 = scalar_select %p447, %s446, 127
      %p449 = scmp.lt.s32.totalorder %s448, 0
      %s450 = ssub.s32 0, %s448
      %s451 = scalar_select %p449, %s450, %s448
      %s452 = sshrl.u32 %s451, 7
      %s453 = ssub.s32 0, %s452
      %s454 = scalar_select %p449, %s453, %s452
      %s455 = sld [smem:[#allocation5 + %s31]]
      %s456 = ssub.s32 %s455, 128
      %p457 = scmp.gt.s32.totalorder %s456, 0
      %s458 = scalar_select %p457, %s456, 0
      %p459 = scmp.lt.s32.totalorder %s458, 127
      %s460 = scalar_select %p459, %s458, 127
      %p461 = scmp.lt.s32.totalorder %s460, 0
      %s462 = ssub.s32 0, %s460
      %s463 = scalar_select %p461, %s462, %s460
      %s464 = sshrl.u32 %s463, 7
      %s465 = ssub.s32 0, %s464
      %s466 = scalar_select %p461, %s465, %s464
      %p467 = scmp.lt.s32.totalorder %s454, %s466
      %s468 = scalar_select %p467, %s454, %s466
      %p469 = scmp.gt.s32.totalorder %s454, %s466
      %s470 = scalar_select %p469, %s454, %s466
      %p471 = scmp.gt.s32.totalorder %s468, %s32
      %s472 = scalar_select %p471, %s468, %s32
      %p473 = scmp.lt.s32.totalorder %s470, %s472
      %s474 = scalar_select %p473, %s470, %s472
      %s475 = smul.u32 16, %s474
      %p476 = scmp.lt.s32.totalorder %s31, 1
      %s477 = scalar_select %p476, %s31, 1
      %s478 = smul.addr %s477, 8
      %s479 = scalar_lea.vmem %s6, %s478
      %s481 = sld [smem:[#allocation4 + %s31]]
      %s482 = sld [smem:[#allocation5 + %s31]]
      %s483 = smul.u32 %s32, 128
      %s484 = sadd.s32 %s483, 128
      %s485 = sadd.s32 %s483, 256
      %p486 = scmp.lt.s32.totalorder %s485, 256
      %s487 = scalar_select %p486, %s485, 256
      %p488 = scmp.eq.s32.totalorder %s32, 0
      // Predicated region
      $region37: #{run.4} parent=35 // pred_check
        %p489 = pneg %p488
      $region38: #{run.4} parent=35 // pred_check_branch
        %491 = sbr.rel (%p489) target = $region40
      $region39: #{run.4} parent=35 // pred_region
        %492 = vst [vmem:[#allocation2] sm:$0xff] 0.0
      $region40: #{run.4} parent=35 // pred_fallthru
        _
      %p493 = scmp.ge.s32.totalorder %s482, %s484
      %p494 = scmp.lt.s32.totalorder %s481, %s487
      %p495 = pnand %p493, %p494
      %p496 = pneg %p495
      // Predicated region
      $region41: #{run.4} parent=35 // pred_check
        _
      $region42: #{run.4} parent=35 // pred_check_branch
        %498 = sbr.rel (%p495) target = $region44
      $region43: #{run.4} parent=35 // pred_region
        %v499 = vld [vmem:[%s405] sm:$0xff]
        %v500 = vstv %s484
        %v501 = vsub.s32 %v499, %v500
        %v502 = vlaneseq
        %v503 = vand.u32 %v502, 127
        %504 = vset.pattern.permute.xlu0 0
        %505 = vperm.xlu0 %504, %v501
        %v506 = vpop.permute.xlu0 %505
        %vm507 = vcmp.eq.s32.totalorder %v506, %v503
        %v508 = vsel %vm507, 1, 0
        %v509 = vcvt.s32.f32 %v508
        %v510 = vpack.c.bf16 %v509, %v509
        %v511 = vld [vmem:[#allocation2] sm:$0xff]
        %v512 = vld [vmem:[%s442] sm:$0xf]
        %v513 = vld [vmem:[%s442 + $0x4] sm:$0xf]
        %v514 = vld [vmem:[%s442 + $0x8] sm:$0xf]
        %v515 = vld [vmem:[%s442 + $0xc] sm:$0xf]
        %v516 = vld [vmem:[%s442 + $0x10] sm:$0xf]
        %v517 = vld [vmem:[%s442 + $0x14] sm:$0xf]
        %v518 = vld [vmem:[%s442 + $0x18] sm:$0xf]
        %v519 = vld [vmem:[%s442 + $0x1c] sm:$0xf]
        %v520 = vld [vmem:[%s442 + $0x20] sm:$0xf]
        %v521 = vld [vmem:[%s442 + $0x24] sm:$0xf]
        %v522 = vld [vmem:[%s442 + $0x28] sm:$0xf]
        %v523 = vld [vmem:[%s442 + $0x2c] sm:$0xf]
        %v524 = vld [vmem:[%s442 + $0x30] sm:$0xf]
        %v525 = vld [vmem:[%s442 + $0x34] sm:$0xf]
        %v526 = vld [vmem:[%s442 + $0x38] sm:$0xf]
        %v527 = vld [vmem:[%s442 + $0x3c] sm:$0xf]
        %v544 = vunpack.c.l.b16 %v512
        %v545 = vunpack.c.l.b16 %v513
        %v546 = vunpack.c.l.b16 %v514
        %v547 = vunpack.c.l.b16 %v515
        %v548 = vunpack.c.l.b16 %v516
        %v549 = vunpack.c.l.b16 %v517
        %v550 = vunpack.c.l.b16 %v518
        %v551 = vunpack.c.l.b16 %v519
        %v552 = vunpack.c.l.b16 %v520
        %v553 = vunpack.c.l.b16 %v521
        %v554 = vunpack.c.l.b16 %v522
        %v555 = vunpack.c.l.b16 %v523
        %v556 = vunpack.c.l.b16 %v524
        %v557 = vunpack.c.l.b16 %v525
        %v558 = vunpack.c.l.b16 %v526
        %v559 = vunpack.c.l.b16 %v527
        %v560 = vpack.c.b16 %v545, %v544
        %v561 = vpack.c.b16 %v547, %v546
        %v562 = vpack.c.b16 %v549, %v548
        %v563 = vpack.c.b16 %v551, %v550
        %v564 = vpack.c.b16 %v553, %v552
        %v565 = vpack.c.b16 %v555, %v554
        %v566 = vpack.c.b16 %v557, %v556
        %v567 = vpack.c.b16 %v559, %v558
        %576 = vmatprep.subr.bf16.mxu0 0
        %577 = vmatpush1.bf16.msra.mxu0 %v560
        %578 = vmatprep.subr.bf16.mxu0 0
        %579 = vmatpush1.bf16.msra.mxu0 %v561
        %580 = vmatprep.subr.bf16.mxu0 0
        %581 = vmatpush1.bf16.msra.mxu0 %v562
        %582 = vmatprep.subr.bf16.mxu0 0
        %583 = vmatpush1.bf16.msra.mxu0 %v563
        %584 = vmatprep.subr.bf16.mxu0 0
        %585 = vmatpush1.bf16.msra.mxu0 %v564
        %586 = vmatprep.subr.bf16.mxu0 0
        %587 = vmatpush1.bf16.msra.mxu0 %v565
        %588 = vmatprep.subr.bf16.mxu0 0
        %589 = vmatpush1.bf16.msra.mxu0 %v566
        %590 = vmatprep.subr.bf16.mxu0 0
        %591 = vmatpush1.bf16.msra.mxu0 %v567
        %592 = vmatprep.subr.bf16.mxu0 0
        %593 = vmatpush1.bf16.msra.mxu0 0
        %594 = vmatprep.subr.bf16.mxu0 0
        %595 = vmatpush1.bf16.msra.mxu0 0
        %596 = vmatprep.subr.bf16.mxu0 0
        %597 = vmatpush1.bf16.msra.mxu0 0
        %598 = vmatprep.subr.bf16.mxu0 0
        %599 = vmatpush1.bf16.msra.mxu0 0
        %600 = vmatprep.subr.bf16.mxu0 0
        %601 = vmatpush1.bf16.msra.mxu0 0
        %602 = vmatprep.subr.bf16.mxu0 0
        %603 = vmatpush1.bf16.msra.mxu0 0
        %604 = vmatprep.subr.bf16.mxu0 0
        %605 = vmatpush1.bf16.msra.mxu0 0
        %606 = vmatprep.subr.bf16.mxu0 0
        %607 = vmatpush1.bf16.msra.mxu0 0
        %608 = vmatprep.mubr.bf16.mxu0 0
        %609 = vmatmul.mubr.bf16.gmra.mrb[0].mxu0 %v510
        %v610 = vpop.f32.mrb[0].mxu0
        %v611 = vadd.f32 0.0, %v610
        %v612 = vpop.f32.mrb[0].mxu0
        %v613 = vpop.f32.mrb[0].mxu0
        %v614 = vpop.f32.mrb[0].mxu0
        %615 = vdwg.mxu0
        %v616 = vadd.f32 %v511, %v611
        %617 = vst [vmem:[#allocation2] sm:$0xff] %v616
      $region44: #{run.4} parent=35 // pred_fallthru
        _
      %p618 = scmp.ge.s32.totalorder %s482, 128
      %p619 = scmp.lt.s32.totalorder %s481, 256
      %p620 = pnand %p618, %p619
      %p621 = pneg %p620
      %p622 = pnand %p488, %p621
      %p623 = pneg %p622
      // Predicated region
      $region45: #{run.4} parent=35 // pred_check
        _
      $region46: #{run.4} parent=35 // pred_check_branch
        %625 = sbr.rel (%p622) target = $region48
      $region47: #{run.4} parent=35 // pred_region
        %v626 = vld [vmem:[%s401] sm:$0xff]
        %v627 = vld [vmem:[#allocation2] sm:$0xff]
        %v628 = vpack.c.bf16 %v627, %v627
        %v629 = vld [vmem:[%s5] sm:$0xf]
        %v630 = vld [vmem:[%s5 + $0x4] sm:$0xf]
        %v631 = vld [vmem:[%s5 + $0x8] sm:$0xf]
        %v632 = vld [vmem:[%s5 + $0xc] sm:$0xf]
        %v633 = vld [vmem:[%s5 + $0x10] sm:$0xf]
        %v634 = vld [vmem:[%s5 + $0x14] sm:$0xf]
        %v635 = vld [vmem:[%s5 + $0x18] sm:$0xf]
        %v636 = vld [vmem:[%s5 + $0x1c] sm:$0xf]
        %v637 = vld [vmem:[%s5 + $0x20] sm:$0xf]
        %v638 = vld [vmem:[%s5 + $0x24] sm:$0xf]
        %v639 = vld [vmem:[%s5 + $0x28] sm:$0xf]
        %v640 = vld [vmem:[%s5 + $0x2c] sm:$0xf]
        %v641 = vld [vmem:[%s5 + $0x30] sm:$0xf]
        %v642 = vld [vmem:[%s5 + $0x34] sm:$0xf]
        %v643 = vld [vmem:[%s5 + $0x38] sm:$0xf]
        %v644 = vld [vmem:[%s5 + $0x3c] sm:$0xf]
        %v661 = vunpack.c.l.b16 %v629
        %v662 = vunpack.c.l.b16 %v630
        %v663 = vunpack.c.l.b16 %v631
        %v664 = vunpack.c.l.b16 %v632
        %v665 = vunpack.c.l.b16 %v633
        %v666 = vunpack.c.l.b16 %v634
        %v667 = vunpack.c.l.b16 %v635
        %v668 = vunpack.c.l.b16 %v636
        %v669 = vunpack.c.l.b16 %v637
        %v670 = vunpack.c.l.b16 %v638
        %v671 = vunpack.c.l.b16 %v639
        %v672 = vunpack.c.l.b16 %v640
        %v673 = vunpack.c.l.b16 %v641
        %v674 = vunpack.c.l.b16 %v642
        %v675 = vunpack.c.l.b16 %v643
        %v676 = vunpack.c.l.b16 %v644
        %v677 = vpack.c.b16 %v662, %v661
        %v678 = vpack.c.b16 %v664, %v663
        %v679 = vpack.c.b16 %v666, %v665
        %v680 = vpack.c.b16 %v668, %v667
        %v681 = vpack.c.b16 %v670, %v669
        %v682 = vpack.c.b16 %v672, %v671
        %v683 = vpack.c.b16 %v674, %v673
        %v684 = vpack.c.b16 %v676, %v675
        %693 = vmatprep.subr.bf16.mxu0 0
        %694 = vmatpush1.bf16.msra.mxu0 %v677
        %695 = vmatprep.subr.bf16.mxu0 0
        %696 = vmatpush1.bf16.msra.mxu0 %v678
        %697 = vmatprep.subr.bf16.mxu0 0
        %698 = vmatpush1.bf16.msra.mxu0 %v679
        %699 = vmatprep.subr.bf16.mxu0 0
        %700 = vmatpush1.bf16.msra.mxu0 %v680
        %701 = vmatprep.subr.bf16.mxu0 0
        %702 = vmatpush1.bf16.msra.mxu0 %v681
        %703 = vmatprep.subr.bf16.mxu0 0
        %704 = vmatpush1.bf16.msra.mxu0 %v682
        %705 = vmatprep.subr.bf16.mxu0 0
        %706 = vmatpush1.bf16.msra.mxu0 %v683
        %707 = vmatprep.subr.bf16.mxu0 0
        %708 = vmatpush1.bf16.msra.mxu0 %v684
        %709 = vmatprep.subr.bf16.mxu0 0
        %710 = vmatpush1.bf16.msra.mxu0 0
        %711 = vmatprep.subr.bf16.mxu0 0
        %712 = vmatpush1.bf16.msra.mxu0 0
        %713 = vmatprep.subr.bf16.mxu0 0
        %714 = vmatpush1.bf16.msra.mxu0 0
        %715 = vmatprep.subr.bf16.mxu0 0
        %716 = vmatpush1.bf16.msra.mxu0 0
        %717 = vmatprep.subr.bf16.mxu0 0
        %718 = vmatpush1.bf16.msra.mxu0 0
        %719 = vmatprep.subr.bf16.mxu0 0
        %720 = vmatpush1.bf16.msra.mxu0 0
        %721 = vmatprep.subr.bf16.mxu0 0
        %722 = vmatpush1.bf16.msra.mxu0 0
        %723 = vmatprep.subr.bf16.mxu0 0
        %724 = vmatpush1.bf16.msra.mxu0 0
        %725 = vmatprep.mubr.bf16.mxu0 0
        %726 = vmatmul.mubr.bf16.gmra.mrb[0].mxu0 %v628
        %v727 = vpop.f32.mrb[0].mxu0
        %v728 = vadd.f32 0.0, %v727
        %v729 = vpop.f32.mrb[0].mxu0
        %v730 = vpop.f32.mrb[0].mxu0
        %v731 = vpop.f32.mrb[0].mxu0
        %732 = vdwg.mxu0
        %v733 = vadd.f32 %v626, %v728
        %734 = vst [vmem:[%s479] sm:$0xff] %v733
      $region48: #{run.4} parent=35 // pred_fallthru
        _
      %p735 = pneg %p621
      %p736 = pnand %p488, %p735
      %p737 = pneg %p736
      // Predicated region
      $region49: #{run.4} parent=35 // pred_check
        _
      $region50: #{run.4} parent=35 // pred_check_branch
        %739 = sbr.rel (%p736) target = $region52
      $region51: #{run.4} parent=35 // pred_region
        %v740 = vld [vmem:[%s401] sm:$0xff]
        %741 = vst [vmem:[%s479] sm:$0xff] %v740
      $region52: #{run.4} parent=35 // pred_fallthru
        _
      %p742 = scmp.lt.s32.totalorder %s31, 1
      %s743 = scalar_select %p742, %s31, 1
      %s744 = smul.addr %s743, 8
      %s745 = scalar_lea.vmem %s6, %s744
      // Predicated region
      $region53: #{run.4} parent=35 // pred_check
        %p746 = pneg %p220
      $region54: #{run.4} parent=35 // pred_check_branch
        %748 = sbr.rel (%p746) target = $region56
      $region55: #{run.4} parent=35 // pred_region
        _
      $region56: #{run.4} parent=35 // pred_fallthru
        _
    $region36: #{run.4} parent=5 // pred_fallthru
      _
    %p749 = scmp.le.s32.totalorder 2, %s22
    // Predicated region
    $region57: #{run.4} parent=5 // pred_check
      %p750 = pneg %p749
    $region58: #{run.4} parent=5 // pred_check_branch
      %752 = sbr.rel (%p750) target = $region60
    $region59: #{run.4} parent=5 // pred_region
      %s753 = ssub.s32 %s22, 2
      // Predicated region
      $region61: #{run.4} parent=59 // pred_check
        %p754 = pneg %p226
      $region62: #{run.4} parent=59 // pred_check_branch
        %756 = sbr.rel (%p754) target = $region64
      $region63: #{run.4} parent=59 // pred_region
        %p757 = scmp.lt.s32.totalorder %s33, 1
        %s758 = scalar_select %p757, %s33, 1
        %s759 = smul.addr %s758, 8
        %s760 = scalar_lea.vmem %s6, %s759
      $region64: #{run.4} parent=59 // pred_fallthru
        _
    $region60: #{run.4} parent=5 // pred_fallthru
      _
  $region6: #{run.4} parent=0 // loop_footer
    %s26 = sadd.s32 1, %s22
  $region7: #{run.4} parent=0 // loop_footer_branch
    %21 = sbr.rel target = $region3
  $region8: #{run.4} parent=0 // loop_exit
    _

// kernel: run.5
$region0: #{run.5}
  #allocation0 [shape = 'u32[]', space=smem, size = 0x4, offset = 0x4, fixed_abs, tag = 'smem constant byte address 0x4 - core index']
  #allocation1 [shape = 'u32[144,128]{1,0:T(1,128)}', space=vmem, size = 0x12000, scoped, tag = 'internal scratch']
  #allocation2 [shape = 'f32[8,128]{1,0:T(8,128)}', space=vmem, size = 0x1000, scoped, tag = 'scratch operand']
  #allocation3 [shape = 's32[1]{0}', space=sflag, size = 0x4, scoped, tag = 'scoped memory for run.5']
  #allocation4 [shape = 'u8[512]{0}', space=smem, size = 0x200, scoped, tag = 'prefetched SMEM operand 0']
  #allocation5 [shape = 'u8[512]{0}', space=smem, size = 0x200, scoped, tag = 'prefetched SMEM operand 1']
  %s0 = inlined_call_operand.vmem [shape: s32[2], index: 0, kind: input, shape index: {}]
  %s1 = inlined_call_operand.vmem [shape: s32[2], index: 1, kind: input, shape index: {}]
  %s2 = inlined_call_operand.hbm [shape: f32[16,128], index: 2, kind: input, shape index: {}, may-alias: {2,6}]
  %s3 = inlined_call_operand.vmem [shape: s32[16,1], index: 3, kind: input, shape index: {}]
  %s4 = inlined_call_operand.vmem [shape: bf16[256,128], index: 4, kind: input, shape index: {}]
  %s5 = inlined_call_operand.vmem [shape: bf16[128,128], index: 5, kind: input, shape index: {}]
  %s6 = inlined_call_operand.hbm [shape: f32[16,128], index: 6, kind: output, shape index: {}, may-alias: {2,6}]
  %s7 = sld [smem:[#allocation0]]
  $region69: #{run.5} parent=0
    _
  %s9 = ssub.s32 1, %s7
  %s10 = scalar_select 0, %s9, %s7
  %s11 = sshll.u32 %s0, 4
  %s12 = int_to_ptr.vmem [resolvable:$true] %s11
  %14 = dma.vmem_to_smem %s12, 16, [#allocation4], [#allocation3]
  %s15 = sshll.u32 %s1, 4
  %s16 = int_to_ptr.vmem [resolvable:$true] %s15
  %18 = dma.vmem_to_smem %s16, 16, [#allocation5], [#allocation3]
  %19 = dma.done [#allocation3], 32
  %20 = sfence
  $region1: #{run.5} parent=0
    #allocation6 [shape = 'u8[8192]{0}', space=vmem, size = 0x2000, scoped, tag = 'input window, operand 2']
    #allocation7 [shape = 's32[2]{0}', space=sflag, size = 0x8, scoped, tag = 'scoped memory for run.5']
    #allocation8 [shape = 's32[2]{0}', space=sflag, size = 0x8, scoped, tag = 'scoped memory for run.5']
    #allocation9 [shape = 'u8[8192]{0}', space=vmem, size = 0x2000, scoped, tag = 'output window, operand 0']
    %21 = vsyncpa [#allocation7], 0
    %s22 = scalar_lea.sflag [#allocation7], 1
    %23 = vsyncpa %s22, 0
    %24 = vsyncpa [#allocation8], 0
    %s25 = scalar_lea.sflag [#allocation8], 1
    %26 = vsyncpa %s25, 0
    loop: start=0, step=1, limit=6
    $region2: #{run.5} parent=1 // loop_pre_header
      _
    $region3: #{run.5} parent=1 // loop_header
      %s28 = sphi 0, %s32
      %p29 = scmp.ge.s32.totalorder %s28, 6
      %s35 = sphi 0, %s47
      %s36 = sphi 0, %s43
      %s37 = sphi 0, %s35
      %s38 = sphi 0, %s36
      %s39 = sphi 0, %s37
      %s40 = sphi 0, %s38
      %s50 = sphi 0, %s52
      %s53 = sphi 0, %s50
      %s54 = sphi 0, %s53
      %s70 = sphi 0, %s54
      %s76 = sphi 0, %s78
      %s79 = sphi 0, %s76
      %s80 = sphi 0, %s79
      %s96 = sphi 0, %s80
      %s166 = sphi 0, %s168
      %s169 = sphi 0, %s166
      %s170 = sphi 0, %s169
      %s186 = sphi 0, %s170
      %s190 = sphi 0, %s190
      %s192 = sphi 0, %s190
      %s193 = sphi 0, %s192
      %s207 = sphi 0, %s193
      %s213 = sphi 0, %s215
      %s216 = sphi 0, %s213
      %s217 = sphi 0, %s216
      %s233 = sphi 0, %s217
    $region4: #{run.5} parent=1 // loop_header_branch
      %31 = sbr.rel (%p29) target = $region8
    $region5: #{run.5} parent=1 // loop_body
      %s33 = ssub.s32 %s28, 1
      %s34 = ssub.s32 %s28, 2
      %s41 = sadd.s32 1, %s36
      %p42 = scmp.ge.s32.totalorder %s41, 2
      %s43 = scalar_select %p42, 0, %s41
      %s44 = sadd.s32 1, %s35
      %s45 = scalar_select %p42, %s44, %s35
      %p46 = scmp.ge.s32.totalorder %s45, 2
      %s47 = scalar_select %p46, 0, %s45
      %s48 = ssub.s32 %s35, %s47
      %p49 = scmp.eq.s32.totalorder %s48, 0
      %s51 = sadd.s32 %s50, 1
      %s52 = scalar_select %p49, %s50, %s51
      %p55 = pneg %p49
      %p56 = scmp.eq.s32.totalorder %s28, 3
      %p57 = por %p55, %p56
      %p58 = scmp.ne.s32.totalorder %s50, %s53
      %p59 = scmp.eq.s32.totalorder %s28, 0
      %p60 = por %p58, %p59
      %p61 = scmp.ne.s32.totalorder %s50, %s53
      %p62 = scmp.eq.s32.totalorder %s33, 3
      %p63 = por %p61, %p62
      %p64 = scmp.ne.s32.totalorder %s53, %s54
      %p65 = scmp.eq.s32.totalorder %s33, 0
      %p66 = por %p64, %p65
      %p67 = scmp.ne.s32.totalorder %s53, %s54
      %p68 = scmp.eq.s32.totalorder %s34, 3
      %p69 = por %p67, %p68
      %p71 = scmp.ne.s32.totalorder %s54, %s70
      %p72 = scmp.eq.s32.totalorder %s34, 0
      %p73 = por %p71, %p72
      %s74 = ssub.s32 %s35, %s47
      %p75 = scmp.eq.s32.totalorder %s74, 0
      %s77 = sadd.s32 %s76, 1
      %s78 = scalar_select %p75, %s76, %s77
      %p81 = pneg %p75
      %p82 = scmp.eq.s32.totalorder %s28, 3
      %p83 = por %p81, %p82
      %p84 = scmp.ne.s32.totalorder %s76, %s79
      %p85 = scmp.eq.s32.totalorder %s28, 0
      %p86 = por %p84, %p85
      %p87 = scmp.ne.s32.totalorder %s76, %s79
      %p88 = scmp.eq.s32.totalorder %s33, 3
      %p89 = por %p87, %p88
      %p90 = scmp.ne.s32.totalorder %s79, %s80
      %p91 = scmp.eq.s32.totalorder %s33, 0
      %p92 = por %p90, %p91
      %p93 = scmp.ne.s32.totalorder %s79, %s80
      %p94 = scmp.eq.s32.totalorder %s34, 3
      %p95 = por %p93, %p94
      %p97 = scmp.ne.s32.totalorder %s80, %s96
      %p98 = scmp.eq.s32.totalorder %s34, 0
      %p99 = por %p97, %p98
      %s100 = sld [smem:[#allocation4 + %s35]]
      %s101 = ssub.s32 %s100, 256
      %p102 = scmp.gt.s32.totalorder %s101, 0
      %s103 = scalar_select %p102, %s101, 0
      %p104 = scmp.lt.s32.totalorder %s103, 255
      %s105 = scalar_select %p104, %s103, 255
      %p106 = scmp.lt.s32.totalorder %s105, 0
      %s107 = ssub.s32 0, %s105
      %s108 = scalar_select %p106, %s107, %s105
      %s109 = sshrl.u32 %s108, 7
      %s110 = ssub.s32 0, %s109
      %s111 = scalar_select %p106, %s110, %s109
      %s112 = sld [smem:[#allocation5 + %s35]]
      %s113 = ssub.s32 %s112, 256
      %p114 = scmp.gt.s32.totalorder %s113, 0
      %s115 = scalar_select %p114, %s113, 0
      %p116 = scmp.lt.s32.totalorder %s115, 255
      %s117 = scalar_select %p116, %s115, 255
      %p118 = scmp.lt.s32.totalorder %s117, 0
      %s119 = ssub.s32 0, %s117
      %s120 = scalar_select %p118, %s119, %s117
      %s121 = sshrl.u32 %s120, 7
      %s122 = ssub.s32 0, %s121
      %s123 = scalar_select %p118, %s122, %s121
      %p124 = scmp.lt.s32.totalorder %s111, %s123
      %s125 = scalar_select %p124, %s111, %s123
      %p126 = scmp.gt.s32.totalorder %s111, %s123
      %s127 = scalar_select %p126, %s111, %s123
      %p128 = scmp.gt.s32.totalorder %s125, %s36
      %s129 = scalar_select %p128, %s125, %s36
      %p130 = scmp.lt.s32.totalorder %s127, %s129
      %s131 = scalar_select %p130, %s127, %s129
      %s132 = sld [smem:[#allocation4 + %s47]]
      %s133 = ssub.s32 %s132, 256
      %p134 = scmp.gt.s32.totalorder %s133, 0
      %s135 = scalar_select %p134, %s133, 0
      %p136 = scmp.lt.s32.totalorder %s135, 255
      %s137 = scalar_select %p136, %s135, 255
      %p138 = scmp.lt.s32.totalorder %s137, 0
      %s139 = ssub.s32 0, %s137
      %s140 = scalar_select %p138, %s139, %s137
      %s141 = sshrl.u32 %s140, 7
      %s142 = ssub.s32 0, %s141
      %s143 = scalar_select %p138, %s142, %s141
      %s144 = sld [smem:[#allocation5 + %s47]]
      %s145 = ssub.s32 %s144, 256
      %p146 = scmp.gt.s32.totalorder %s145, 0
      %s147 = scalar_select %p146, %s145, 0
      %p148 = scmp.lt.s32.totalorder %s147, 255
      %s149 = scalar_select %p148, %s147, 255
      %p150 = scmp.lt.s32.totalorder %s149, 0
      %s151 = ssub.s32 0, %s149
      %s152 = scalar_select %p150, %s151, %s149
      %s153 = sshrl.u32 %s152, 7
      %s154 = ssub.s32 0, %s153
      %s155 = scalar_select %p150, %s154, %s153
      %p156 = scmp.lt.s32.totalorder %s143, %s155
      %s157 = scalar_select %p156, %s143, %s155
      %p158 = scmp.gt.s32.totalorder %s143, %s155
      %s159 = scalar_select %p158, %s143, %s155
      %p160 = scmp.gt.s32.totalorder %s157, %s43
      %s161 = scalar_select %p160, %s157, %s43
      %p162 = scmp.lt.s32.totalorder %s159, %s161
      %s163 = scalar_select %p162, %s159, %s161
      %s164 = ssub.s32 %s131, %s163
      %p165 = scmp.eq.s32.totalorder %s164, 0
      %s167 = sadd.s32 %s166, 1
      %s168 = scalar_select %p165, %s166, %s167
      %p171 = pneg %p165
      %p172 = scmp.eq.s32.totalorder %s28, 3
      %p173 = por %p171, %p172
      %p174 = scmp.ne.s32.totalorder %s166, %s169
      %p175 = scmp.eq.s32.totalorder %s28, 0
      %p176 = por %p174, %p175
      %p177 = scmp.ne.s32.totalorder %s166, %s169
      %p178 = scmp.eq.s32.totalorder %s33, 3
      %p179 = por %p177, %p178
      %p180 = scmp.ne.s32.totalorder %s169, %s170
      %p181 = scmp.eq.s32.totalorder %s33, 0
      %p182 = por %p180, %p181
      %p183 = scmp.ne.s32.totalorder %s169, %s170
      %p184 = scmp.eq.s32.totalorder %s34, 3
      %p185 = por %p183, %p184
      %p187 = scmp.ne.s32.totalorder %s170, %s186
      %p188 = scmp.eq.s32.totalorder %s34, 0
      %p189 = por %p187, %p188
      %s191 = sadd.s32 %s190, 1
      %p194 = scmp.eq.s32.totalorder %s28, 3
      %p195 = scmp.ne.s32.totalorder %s190, %s192
      %p196 = scmp.eq.s32.totalorder %s28, 0
      %p197 = por %p195, %p196
      %p198 = scmp.ne.s32.totalorder %s190, %s192
      %p199 = scmp.eq.s32.totalorder %s33, 3
      %p200 = por %p198, %p199
      %p201 = scmp.ne.s32.totalorder %s192, %s193
      %p202 = scmp.eq.s32.totalorder %s33, 0
      %p203 = por %p201, %p202
      %p204 = scmp.ne.s32.totalorder %s192, %s193
      %p205 = scmp.eq.s32.totalorder %s34, 3
      %p206 = por %p204, %p205
      %p208 = scmp.ne.s32.totalorder %s193, %s207
      %p209 = scmp.eq.s32.totalorder %s34, 0
      %p210 = por %p208, %p209
      %s211 = ssub.s32 %s35, %s47
      %p212 = scmp.eq.s32.totalorder %s211, 0
      %s214 = sadd.s32 %s213, 1
      %s215 = scalar_select %p212, %s213, %s214
      %p218 = pneg %p212
      %p219 = scmp.eq.s32.totalorder %s28, 3
      %p220 = por %p218, %p219
      %p221 = scmp.ne.s32.totalorder %s213, %s216
      %p222 = scmp.eq.s32.totalorder %s28, 0
      %p223 = por %p221, %p222
      %p224 = scmp.ne.s32.totalorder %s213, %s216
      %p225 = scmp.eq.s32.totalorder %s33, 3
      %p226 = por %p224, %p225
      %p227 = scmp.ne.s32.totalorder %s216, %s217
      %p228 = scmp.eq.s32.totalorder %s33, 0
      %p229 = por %p227, %p228
      %p230 = scmp.ne.s32.totalorder %s216, %s217
      %p231 = scmp.eq.s32.totalorder %s34, 3
      %p232 = por %p230, %p231
      %p234 = scmp.ne.s32.totalorder %s217, %s233
      %p235 = scmp.eq.s32.totalorder %s34, 0
      %p236 = por %p234, %p235
      %p237 = scmp.le.s32.totalorder 1, %s28
      %p238 = scmp.lt.s32.totalorder %s28, 5
      %p239 = pnand %p237, %p238
      %p240 = pneg %p239
      // Predicated region
      $region9: #{run.5} parent=5 // pred_check
        _
      $region10: #{run.5} parent=5 // pred_check_branch
        %242 = sbr.rel (%p239) target = $region12
      $region11: #{run.5} parent=5 // pred_region
        %s243 = ssub.s32 %s28, 1
        // Predicated region
        $region13: #{run.5} parent=11 // pred_check
          %p244 = pneg %p203
        $region14: #{run.5} parent=11 // pred_check_branch
          %246 = sbr.rel (%p244) target = $region16
        $region15: #{run.5} parent=11 // pred_region
          _
        $region16: #{run.5} parent=11 // pred_fallthru
          _
      $region12: #{run.5} parent=5 // pred_fallthru
        _
      %p247 = scmp.lt.s32.totalorder %s28, 4
      // Predicated region
      $region17: #{run.5} parent=5 // pred_check
        %p248 = pneg %p247
      $region18: #{run.5} parent=5 // pred_check_branch
        %250 = sbr.rel (%p248) target = $region20
      $region19: #{run.5} parent=5 // pred_region
        // Predicated region
        $region21: #{run.5} parent=19 // pred_check
          %p251 = pneg %p60
        $region22: #{run.5} parent=19 // pred_check_branch
          %253 = sbr.rel (%p251) target = $region24
        $region23: #{run.5} parent=19 // pred_region
          %s254 = sand.u32 %s50, 1
          %s255 = scalar_lea.sflag [#allocation7], %s254
          %s256 = sand.u32 %s50, 1
          %s257 = smul.addr %s256, 8
          %s258 = scalar_lea.vmem [#allocation6], %s257
          %s260 = ssub.s32 128, 128
          %261 = vsyncadd %s255, %s260
          %s262 = smul.addr %s35, 128
          %s263 = scalar_lea.hbm %s2, %s262
          %s265 = sshll.u32 %s258, 4
          %s266 = int_to_ptr.vmem [resolvable:$true] %s265
          %268 = dma.hbm_to_vmem [thread:$0]  %s263, 128, %s266, %s255
        $region24: #{run.5} parent=19 // pred_fallthru
          _
        // Predicated region
        $region25: #{run.5} parent=19 // pred_check
          %p269 = pneg %p86
        $region26: #{run.5} parent=19 // pred_check_branch
          %271 = sbr.rel (%p269) target = $region28
        $region27: #{run.5} parent=19 // pred_region
          %p272 = scmp.lt.s32.totalorder %s35, 1
          %s273 = scalar_select %p272, %s35, 1
          %s274 = smul.addr %s273, 8
          %s275 = scalar_lea.vmem %s3, %s274
        $region28: #{run.5} parent=19 // pred_fallthru
          _
        // Predicated region
        $region29: #{run.5} parent=19 // pred_check
          %p276 = pneg %p176
        $region30: #{run.5} parent=19 // pred_check_branch
          %278 = sbr.rel (%p276) target = $region32
        $region31: #{run.5} parent=19 // pred_region
          %s279 = sld [smem:[#allocation4 + %s35]]
          %s280 = ssub.s32 %s279, 256
          %p281 = scmp.gt.s32.totalorder %s280, 0
          %s282 = scalar_select %p281, %s280, 0
          %p283 = scmp.lt.s32.totalorder %s282, 255
          %s284 = scalar_select %p283, %s282, 255
          %p285 = scmp.lt.s32.totalorder %s284, 0
          %s286 = ssub.s32 0, %s284
          %s287 = scalar_select %p285, %s286, %s284
          %s288 = sshrl.u32 %s287, 7
          %s289 = ssub.s32 0, %s288
          %s290 = scalar_select %p285, %s289, %s288
          %s291 = sld [smem:[#allocation5 + %s35]]
          %s292 = ssub.s32 %s291, 256
          %p293 = scmp.gt.s32.totalorder %s292, 0
          %s294 = scalar_select %p293, %s292, 0
          %p295 = scmp.lt.s32.totalorder %s294, 255
          %s296 = scalar_select %p295, %s294, 255
          %p297 = scmp.lt.s32.totalorder %s296, 0
          %s298 = ssub.s32 0, %s296
          %s299 = scalar_select %p297, %s298, %s296
          %s300 = sshrl.u32 %s299, 7
          %s301 = ssub.s32 0, %s300
          %s302 = scalar_select %p297, %s301, %s300
          %p303 = scmp.lt.s32.totalorder %s290, %s302
          %s304 = scalar_select %p303, %s290, %s302
          %p305 = scmp.gt.s32.totalorder %s290, %s302
          %s306 = scalar_select %p305, %s290, %s302
          %p307 = scmp.gt.s32.totalorder %s304, %s36
          %s308 = scalar_select %p307, %s304, %s36
          %p309 = scmp.lt.s32.totalorder %s306, %s308
          %s310 = scalar_select %p309, %s306, %s308
          %s311 = smul.u32 16, %s310
          %p312 = scmp.lt.s32.totalorder %s311, 31
          %s313 = scalar_select %p312, %s311, 31
          %s314 = smul.addr %s313, 4
          %s315 = scalar_lea.vmem %s4, %s314
          %s316 = sld [smem:[#allocation4 + %s35]]
          %s317 = ssub.s32 %s316, 256
          %p318 = scmp.gt.s32.totalorder %s317, 0
          %s319 = scalar_select %p318, %s317, 0
          %p320 = scmp.lt.s32.totalorder %s319, 255
          %s321 = scalar_select %p320, %s319, 255
          %p322 = scmp.lt.s32.totalorder %s321, 0
          %s323 = ssub.s32 0, %s321
          %s324 = scalar_select %p322, %s323, %s321
          %s325 = sshrl.u32 %s324, 7
          %s326 = ssub.s32 0, %s325
          %s327 = scalar_select %p322, %s326, %s325
          %s328 = sld [smem:[#allocation5 + %s35]]
          %s329 = ssub.s32 %s328, 256
          %p330 = scmp.gt.s32.totalorder %s329, 0
          %s331 = scalar_select %p330, %s329, 0
          %p332 = scmp.lt.s32.totalorder %s331, 255
          %s333 = scalar_select %p332, %s331, 255
          %p334 = scmp.lt.s32.totalorder %s333, 0
          %s335 = ssub.s32 0, %s333
          %s336 = scalar_select %p334, %s335, %s333
          %s337 = sshrl.u32 %s336, 7
          %s338 = ssub.s32 0, %s337
          %s339 = scalar_select %p334, %s338, %s337
          %p340 = scmp.lt.s32.totalorder %s327, %s339
          %s341 = scalar_select %p340, %s327, %s339
          %p342 = scmp.gt.s32.totalorder %s327, %s339
          %s343 = scalar_select %p342, %s327, %s339
          %p344 = scmp.gt.s32.totalorder %s341, %s36
          %s345 = scalar_select %p344, %s341, %s36
          %p346 = scmp.lt.s32.totalorder %s343, %s345
          %s347 = scalar_select %p346, %s343, %s345
          %s348 = smul.u32 16, %s347
        $region32: #{run.5} parent=19 // pred_fallthru
          _
      $region20: #{run.5} parent=5 // pred_fallthru
        _
      %p349 = scmp.le.s32.totalorder 1, %s28
      %p350 = scmp.lt.s32.totalorder %s28, 5
      %p351 = pnand %p349, %p350
      %p352 = pneg %p351
      // Predicated region
      $region33: #{run.5} parent=5 // pred_check
        _
      $region34: #{run.5} parent=5 // pred_check_branch
        %354 = sbr.rel (%p351) target = $region36
      $region35: #{run.5} parent=5 // pred_region
        %s355 = ssub.s32 %s28, 1
        %s356 = sand.u32 %s53, 1
        %s357 = scalar_lea.sflag [#allocation7], %s356
        %s358 = sand.u32 %s53, 1
        %s359 = smul.addr %s358, 8
        %s360 = scalar_lea.vmem [#allocation6], %s359
        // Predicated region
        $region37: #{run.5} parent=35 // pred_check
          %p361 = pneg %p66
        $region38: #{run.5} parent=35 // pred_check_branch
          %363 = sbr.rel (%p361) target = $region40
        $region39: #{run.5} parent=35 // pred_region
          %364 = dma.done %s357, 128
        $region40: #{run.5} parent=35 // pred_fallthru
          _
        %s365 = sand.u32 %s53, 1
        %s366 = scalar_lea.sflag [#allocation7], %s365
        %s367 = sand.u32 %s53, 1
        %s368 = smul.addr %s367, 8
        %s369 = scalar_lea.vmem [#allocation6], %s368
        %p370 = pneg %p66
        %p371 = pneg %p63
        %p372 = scmp.lt.s32.totalorder %s37, 1
        %s373 = scalar_select %p372, %s37, 1
        %s374 = smul.addr %s373, 8
        %s375 = scalar_lea.vmem %s3, %s374
        %p376 = pneg %p92
        %p377 = pneg %p89
        %s378 = sld [smem:[#allocation4 + %s37]]
        %s379 = ssub.s32 %s378, 256
        %p380 = scmp.gt.s32.totalorder %s379, 0
        %s381 = scalar_select %p380, %s379, 0
        %p382 = scmp.lt.s32.totalorder %s381, 255
        %s383 = scalar_select %p382, %s381, 255
        %p384 = scmp.lt.s32.totalorder %s383, 0
        %s385 = ssub.s32 0, %s383
        %s386 = scalar_select %p384, %s385, %s383
        %s387 = sshrl.u32 %s386, 7
        %s388 = ssub.s32 0, %s387
        %s389 = scalar_select %p384, %s388, %s387
        %s390 = sld [smem:[#allocation5 + %s37]]
        %s391 = ssub.s32 %s390, 256
        %p392 = scmp.gt.s32.totalorder %s391, 0
        %s393 = scalar_select %p392, %s391, 0
        %p394 = scmp.lt.s32.totalorder %s393, 255
        %s395 = scalar_select %p394, %s393, 255
        %p396 = scmp.lt.s32.totalorder %s395, 0
        %s397 = ssub.s32 0, %s395
        %s398 = scalar_select %p396, %s397, %s395
        %s399 = sshrl.u32 %s398, 7
        %s400 = ssub.s32 0, %s399
        %s401 = scalar_select %p396, %s400, %s399
        %p402 = scmp.lt.s32.totalorder %s389, %s401
        %s403 = scalar_select %p402, %s389, %s401
        %p404 = scmp.gt.s32.totalorder %s389, %s401
        %s405 = scalar_select %p404, %s389, %s401
        %p406 = scmp.gt.s32.totalorder %s403, %s38
        %s407 = scalar_select %p406, %s403, %s38
        %p408 = scmp.lt.s32.totalorder %s405, %s407
        %s409 = scalar_select %p408, %s405, %s407
        %s410 = smul.u32 16, %s409
        %p411 = scmp.lt.s32.totalorder %s410, 31
        %s412 = scalar_select %p411, %s410, 31
        %s413 = smul.addr %s412, 4
        %s414 = scalar_lea.vmem %s4, %s413
        %p415 = pneg %p182
        %p416 = pneg %p179
        %p417 = pneg %p203
        %p418 = pneg %p200
        %p419 = pneg %p229
        %p420 = pneg %p226
        %s421 = sand.u32 %s216, 1
        %s422 = scalar_lea.sflag [#allocation8], %s421
        %s423 = sand.u32 %s216, 1
        %s424 = smul.addr %s423, 8
        %s425 = scalar_lea.vmem [#allocation9], %s424
        %p426 = scmp.lt.s32.totalorder %s37, 1
        %s427 = scalar_select %p426, %s37, 1
        %s428 = smul.addr %s427, 8
        %s429 = scalar_lea.vmem %s3, %s428
        %s430 = sld [smem:[#allocation4 + %s37]]
        %s431 = ssub.s32 %s430, 256
        %p432 = scmp.gt.s32.totalorder %s431, 0
        %s433 = scalar_select %p432, %s431, 0
        %p434 = scmp.lt.s32.totalorder %s433, 255
        %s435 = scalar_select %p434, %s433, 255
        %p436 = scmp.lt.s32.totalorder %s435, 0
        %s437 = ssub.s32 0, %s435
        %s438 = scalar_select %p436, %s437, %s435
        %s439 = sshrl.u32 %s438, 7
        %s440 = ssub.s32 0, %s439
        %s441 = scalar_select %p436, %s440, %s439
        %s442 = sld [smem:[#allocation5 + %s37]]
        %s443 = ssub.s32 %s442, 256
        %p444 = scmp.gt.s32.totalorder %s443, 0
        %s445 = scalar_select %p444, %s443, 0
        %p446 = scmp.lt.s32.totalorder %s445, 255
        %s447 = scalar_select %p446, %s445, 255
        %p448 = scmp.lt.s32.totalorder %s447, 0
        %s449 = ssub.s32 0, %s447
        %s450 = scalar_select %p448, %s449, %s447
        %s451 = sshrl.u32 %s450, 7
        %s452 = ssub.s32 0, %s451
        %s453 = scalar_select %p448, %s452, %s451
        %p454 = scmp.lt.s32.totalorder %s441, %s453
        %s455 = scalar_select %p454, %s441, %s453
        %p456 = scmp.gt.s32.totalorder %s441, %s453
        %s457 = scalar_select %p456, %s441, %s453
        %p458 = scmp.gt.s32.totalorder %s455, %s38
        %s459 = scalar_select %p458, %s455, %s38
        %p460 = scmp.lt.s32.totalorder %s457, %s459
        %s461 = scalar_select %p460, %s457, %s459
        %s462 = smul.u32 16, %s461
        %p463 = scmp.lt.s32.totalorder %s462, 31
        %s464 = scalar_select %p463, %s462, 31
        %s465 = smul.addr %s464, 4
        %s466 = scalar_lea.vmem %s4, %s465
        %s467 = sld [smem:[#allocation4 + %s37]]
        %s468 = ssub.s32 %s467, 256
        %p469 = scmp.gt.s32.totalorder %s468, 0
        %s470 = scalar_select %p469, %s468, 0
        %p471 = scmp.lt.s32.totalorder %s470, 255
        %s472 = scalar_select %p471, %s470, 255
        %p473 = scmp.lt.s32.totalorder %s472, 0
        %s474 = ssub.s32 0, %s472
        %s475 = scalar_select %p473, %s474, %s472
        %s476 = sshrl.u32 %s475, 7
        %s477 = ssub.s32 0, %s476
        %s478 = scalar_select %p473, %s477, %s476
        %s479 = sld [smem:[#allocation5 + %s37]]
        %s480 = ssub.s32 %s479, 256
        %p481 = scmp.gt.s32.totalorder %s480, 0
        %s482 = scalar_select %p481, %s480, 0
        %p483 = scmp.lt.s32.totalorder %s482, 255
        %s484 = scalar_select %p483, %s482, 255
        %p485 = scmp.lt.s32.totalorder %s484, 0
        %s486 = ssub.s32 0, %s484
        %s487 = scalar_select %p485, %s486, %s484
        %s488 = sshrl.u32 %s487, 7
        %s489 = ssub.s32 0, %s488
        %s490 = scalar_select %p485, %s489, %s488
        %p491 = scmp.lt.s32.totalorder %s478, %s490
        %s492 = scalar_select %p491, %s478, %s490
        %p493 = scmp.gt.s32.totalorder %s478, %s490
        %s494 = scalar_select %p493, %s478, %s490
        %p495 = scmp.gt.s32.totalorder %s492, %s38
        %s496 = scalar_select %p495, %s492, %s38
        %p497 = scmp.lt.s32.totalorder %s494, %s496
        %s498 = scalar_select %p497, %s494, %s496
        %s499 = smul.u32 16, %s498
        %s501 = sld [smem:[#allocation4 + %s37]]
        %s502 = sld [smem:[#allocation5 + %s37]]
        %s503 = smul.u32 %s38, 128
        %s504 = sadd.s32 %s503, 256
        %s505 = sadd.s32 %s503, 384
        %p506 = scmp.lt.s32.totalorder %s505, 512
        %s507 = scalar_select %p506, %s505, 512
        %p508 = scmp.eq.s32.totalorder %s38, 0
        // Predicated region
        $region41: #{run.5} parent=35 // pred_check
          %p509 = pneg %p508
        $region42: #{run.5} parent=35 // pred_check_branch
          %511 = sbr.rel (%p509) target = $region44
        $region43: #{run.5} parent=35 // pred_region
          %512 = vst [vmem:[#allocation2] sm:$0xff] 0.0
        $region44: #{run.5} parent=35 // pred_fallthru
          _
        %p513 = scmp.ge.s32.totalorder %s502, %s504
        %p514 = scmp.lt.s32.totalorder %s501, %s507
        %p515 = pnand %p513, %p514
        %p516 = pneg %p515
        // Predicated region
        $region45: #{run.5} parent=35 // pred_check
          _
        $region46: #{run.5} parent=35 // pred_check_branch
          %518 = sbr.rel (%p515) target = $region48
        $region47: #{run.5} parent=35 // pred_region
          %v519 = vld [vmem:[%s429] sm:$0xff]
          %v520 = vstv %s504
          %v521 = vsub.s32 %v519, %v520
          %v522 = vlaneseq
          %v523 = vand.u32 %v522, 127
          %524 = vset.pattern.permute.xlu0 0
          %525 = vperm.xlu0 %524, %v521
          %v526 = vpop.permute.xlu0 %525
          %vm527 = vcmp.eq.s32.totalorder %v526, %v523
          %v528 = vsel %vm527, 1, 0
          %v529 = vcvt.s32.f32 %v528
          %v530 = vpack.c.bf16 %v529, %v529
          %v531 = vld [vmem:[#allocation2] sm:$0xff]
          %v532 = vld [vmem:[%s466] sm:$0xf]
          %v533 = vld [vmem:[%s466 + $0x4] sm:$0xf]
          %v534 = vld [vmem:[%s466 + $0x8] sm:$0xf]
          %v535 = vld [vmem:[%s466 + $0xc] sm:$0xf]
          %v536 = vld [vmem:[%s466 + $0x10] sm:$0xf]
          %v537 = vld [vmem:[%s466 + $0x14] sm:$0xf]
          %v538 = vld [vmem:[%s466 + $0x18] sm:$0xf]
          %v539 = vld [vmem:[%s466 + $0x1c] sm:$0xf]
          %v540 = vld [vmem:[%s466 + $0x20] sm:$0xf]
          %v541 = vld [vmem:[%s466 + $0x24] sm:$0xf]
          %v542 = vld [vmem:[%s466 + $0x28] sm:$0xf]
          %v543 = vld [vmem:[%s466 + $0x2c] sm:$0xf]
          %v544 = vld [vmem:[%s466 + $0x30] sm:$0xf]
          %v545 = vld [vmem:[%s466 + $0x34] sm:$0xf]
          %v546 = vld [vmem:[%s466 + $0x38] sm:$0xf]
          %v547 = vld [vmem:[%s466 + $0x3c] sm:$0xf]
          %v564 = vunpack.c.l.b16 %v532
          %v565 = vunpack.c.l.b16 %v533
          %v566 = vunpack.c.l.b16 %v534
          %v567 = vunpack.c.l.b16 %v535
          %v568 = vunpack.c.l.b16 %v536
          %v569 = vunpack.c.l.b16 %v537
          %v570 = vunpack.c.l.b16 %v538
          %v571 = vunpack.c.l.b16 %v539
          %v572 = vunpack.c.l.b16 %v540
          %v573 = vunpack.c.l.b16 %v541
          %v574 = vunpack.c.l.b16 %v542
          %v575 = vunpack.c.l.b16 %v543
          %v576 = vunpack.c.l.b16 %v544
          %v577 = vunpack.c.l.b16 %v545
          %v578 = vunpack.c.l.b16 %v546
          %v579 = vunpack.c.l.b16 %v547
          %v580 = vpack.c.b16 %v565, %v564
          %v581 = vpack.c.b16 %v567, %v566
          %v582 = vpack.c.b16 %v569, %v568
          %v583 = vpack.c.b16 %v571, %v570
          %v584 = vpack.c.b16 %v573, %v572
          %v585 = vpack.c.b16 %v575, %v574
          %v586 = vpack.c.b16 %v577, %v576
          %v587 = vpack.c.b16 %v579, %v578
          %596 = vmatprep.subr.bf16.mxu0 0
          %597 = vmatpush1.bf16.msra.mxu0 %v580
          %598 = vmatprep.subr.bf16.mxu0 0
          %599 = vmatpush1.bf16.msra.mxu0 %v581
          %600 = vmatprep.subr.bf16.mxu0 0
          %601 = vmatpush1.bf16.msra.mxu0 %v582
          %602 = vmatprep.subr.bf16.mxu0 0
          %603 = vmatpush1.bf16.msra.mxu0 %v583
          %604 = vmatprep.subr.bf16.mxu0 0
          %605 = vmatpush1.bf16.msra.mxu0 %v584
          %606 = vmatprep.subr.bf16.mxu0 0
          %607 = vmatpush1.bf16.msra.mxu0 %v585
          %608 = vmatprep.subr.bf16.mxu0 0
          %609 = vmatpush1.bf16.msra.mxu0 %v586
          %610 = vmatprep.subr.bf16.mxu0 0
          %611 = vmatpush1.bf16.msra.mxu0 %v587
          %612 = vmatprep.subr.bf16.mxu0 0
          %613 = vmatpush1.bf16.msra.mxu0 0
          %614 = vmatprep.subr.bf16.mxu0 0
          %615 = vmatpush1.bf16.msra.mxu0 0
          %616 = vmatprep.subr.bf16.mxu0 0
          %617 = vmatpush1.bf16.msra.mxu0 0
          %618 = vmatprep.subr.bf16.mxu0 0
          %619 = vmatpush1.bf16.msra.mxu0 0
          %620 = vmatprep.subr.bf16.mxu0 0
          %621 = vmatpush1.bf16.msra.mxu0 0
          %622 = vmatprep.subr.bf16.mxu0 0
          %623 = vmatpush1.bf16.msra.mxu0 0
          %624 = vmatprep.subr.bf16.mxu0 0
          %625 = vmatpush1.bf16.msra.mxu0 0
          %626 = vmatprep.subr.bf16.mxu0 0
          %627 = vmatpush1.bf16.msra.mxu0 0
          %628 = vmatprep.mubr.bf16.mxu0 0
          %629 = vmatmul.mubr.bf16.gmra.mrb[0].mxu0 %v530
          %v630 = vpop.f32.mrb[0].mxu0
          %v631 = vadd.f32 0.0, %v630
          %v632 = vpop.f32.mrb[0].mxu0
          %v633 = vpop.f32.mrb[0].mxu0
          %v634 = vpop.f32.mrb[0].mxu0
          %635 = vdwg.mxu0
          %v636 = vadd.f32 %v531, %v631
          %637 = vst [vmem:[#allocation2] sm:$0xff] %v636
        $region48: #{run.5} parent=35 // pred_fallthru
          _
        %p638 = scmp.eq.s32.totalorder %s38, 1
        %p639 = scmp.ge.s32.totalorder %s502, 256
        %p640 = scmp.lt.s32.totalorder %s501, 512
        %p641 = pnand %p639, %p640
        %p642 = pneg %p641
        %p643 = pnand %p638, %p642
        %p644 = pneg %p643
        // Predicated region
        $region49: #{run.5} parent=35 // pred_check
          _
        $region50: #{run.5} parent=35 // pred_check_branch
          %646 = sbr.rel (%p643) target = $region52
        $region51: #{run.5} parent=35 // pred_region
          %v647 = vld [vmem:[%s360] sm:$0xff]
          %v648 = vld [vmem:[#allocation2] sm:$0xff]
          %v649 = vpack.c.bf16 %v648, %v648
          %v650 = vld [vmem:[%s5] sm:$0xf]
          %v651 = vld [vmem:[%s5 + $0x4] sm:$0xf]
          %v652 = vld [vmem:[%s5 + $0x8] sm:$0xf]
          %v653 = vld [vmem:[%s5 + $0xc] sm:$0xf]
          %v654 = vld [vmem:[%s5 + $0x10] sm:$0xf]
          %v655 = vld [vmem:[%s5 + $0x14] sm:$0xf]
          %v656 = vld [vmem:[%s5 + $0x18] sm:$0xf]
          %v657 = vld [vmem:[%s5 + $0x1c] sm:$0xf]
          %v658 = vld [vmem:[%s5 + $0x20] sm:$0xf]
          %v659 = vld [vmem:[%s5 + $0x24] sm:$0xf]
          %v660 = vld [vmem:[%s5 + $0x28] sm:$0xf]
          %v661 = vld [vmem:[%s5 + $0x2c] sm:$0xf]
          %v662 = vld [vmem:[%s5 + $0x30] sm:$0xf]
          %v663 = vld [vmem:[%s5 + $0x34] sm:$0xf]
          %v664 = vld [vmem:[%s5 + $0x38] sm:$0xf]
          %v665 = vld [vmem:[%s5 + $0x3c] sm:$0xf]
          %v682 = vunpack.c.l.b16 %v650
          %v683 = vunpack.c.l.b16 %v651
          %v684 = vunpack.c.l.b16 %v652
          %v685 = vunpack.c.l.b16 %v653
          %v686 = vunpack.c.l.b16 %v654
          %v687 = vunpack.c.l.b16 %v655
          %v688 = vunpack.c.l.b16 %v656
          %v689 = vunpack.c.l.b16 %v657
          %v690 = vunpack.c.l.b16 %v658
          %v691 = vunpack.c.l.b16 %v659
          %v692 = vunpack.c.l.b16 %v660
          %v693 = vunpack.c.l.b16 %v661
          %v694 = vunpack.c.l.b16 %v662
          %v695 = vunpack.c.l.b16 %v663
          %v696 = vunpack.c.l.b16 %v664
          %v697 = vunpack.c.l.b16 %v665
          %v698 = vpack.c.b16 %v683, %v682
          %v699 = vpack.c.b16 %v685, %v684
          %v700 = vpack.c.b16 %v687, %v686
          %v701 = vpack.c.b16 %v689, %v688
          %v702 = vpack.c.b16 %v691, %v690
          %v703 = vpack.c.b16 %v693, %v692
          %v704 = vpack.c.b16 %v695, %v694
          %v705 = vpack.c.b16 %v697, %v696
          %714 = vmatprep.subr.bf16.mxu0 0
          %715 = vmatpush1.bf16.msra.mxu0 %v698
          %716 = vmatprep.subr.bf16.mxu0 0
          %717 = vmatpush1.bf16.msra.mxu0 %v699
          %718 = vmatprep.subr.bf16.mxu0 0
          %719 = vmatpush1.bf16.msra.mxu0 %v700
          %720 = vmatprep.subr.bf16.mxu0 0
          %721 = vmatpush1.bf16.msra.mxu0 %v701
          %722 = vmatprep.subr.bf16.mxu0 0
          %723 = vmatpush1.bf16.msra.mxu0 %v702
          %724 = vmatprep.subr.bf16.mxu0 0
          %725 = vmatpush1.bf16.msra.mxu0 %v703
          %726 = vmatprep.subr.bf16.mxu0 0
          %727 = vmatpush1.bf16.msra.mxu0 %v704
          %728 = vmatprep.subr.bf16.mxu0 0
          %729 = vmatpush1.bf16.msra.mxu0 %v705
          %730 = vmatprep.subr.bf16.mxu0 0
          %731 = vmatpush1.bf16.msra.mxu0 0
          %732 = vmatprep.subr.bf16.mxu0 0
          %733 = vmatpush1.bf16.msra.mxu0 0
          %734 = vmatprep.subr.bf16.mxu0 0
          %735 = vmatpush1.bf16.msra.mxu0 0
          %736 = vmatprep.subr.bf16.mxu0 0
          %737 = vmatpush1.bf16.msra.mxu0 0
          %738 = vmatprep.subr.bf16.mxu0 0
          %739 = vmatpush1.bf16.msra.mxu0 0
          %740 = vmatprep.subr.bf16.mxu0 0
          %741 = vmatpush1.bf16.msra.mxu0 0
          %742 = vmatprep.subr.bf16.mxu0 0
          %743 = vmatpush1.bf16.msra.mxu0 0
          %744 = vmatprep.subr.bf16.mxu0 0
          %745 = vmatpush1.bf16.msra.mxu0 0
          %746 = vmatprep.mubr.bf16.mxu0 0
          %747 = vmatmul.mubr.bf16.gmra.mrb[0].mxu0 %v649
          %v748 = vpop.f32.mrb[0].mxu0
          %v749 = vadd.f32 0.0, %v748
          %v750 = vpop.f32.mrb[0].mxu0
          %v751 = vpop.f32.mrb[0].mxu0
          %v752 = vpop.f32.mrb[0].mxu0
          %753 = vdwg.mxu0
          %v754 = vadd.f32 %v647, %v749
          %755 = vst [vmem:[%s425] sm:$0xff] %v754
        $region52: #{run.5} parent=35 // pred_fallthru
          _
        %p756 = pneg %p642
        %p757 = pnand %p638, %p756
        %p758 = pneg %p757
        // Predicated region
        $region53: #{run.5} parent=35 // pred_check
          _
        $region54: #{run.5} parent=35 // pred_check_branch
          %760 = sbr.rel (%p757) target = $region56
        $region55: #{run.5} parent=35 // pred_region
          %v761 = vld [vmem:[%s360] sm:$0xff]
          %762 = vst [vmem:[%s425] sm:$0xff] %v761
        $region56: #{run.5} parent=35 // pred_fallthru
          _
        %s763 = sand.u32 %s216, 1
        %s764 = scalar_lea.sflag [#allocation8], %s763
        %s765 = sand.u32 %s216, 1
        %s766 = smul.addr %s765, 8
        %s767 = scalar_lea.vmem [#allocation9], %s766
        // Predicated region
        $region57: #{run.5} parent=35 // pred_check
          %p768 = pneg %p226
        $region58: #{run.5} parent=35 // pred_check_branch
          %770 = sbr.rel (%p768) target = $region60
        $region59: #{run.5} parent=35 // pred_region
          %s772 = ssub.s32 128, 128
          %773 = vsyncadd %s764, %s772
          %s774 = smul.addr %s37, 128
          %s775 = scalar_lea.hbm %s6, %s774
          %s777 = sshll.u32 %s767, 4
          %s778 = int_to_ptr.vmem [resolvable:$true] %s777
          %780 = dma.vmem_to_hbm [thread:$0]  %s778, 128, %s775, %s764
        $region60: #{run.5} parent=35 // pred_fallthru
          _
      $region36: #{run.5} parent=5 // pred_fallthru
        _
      %p781 = scmp.le.s32.totalorder 2, %s28
      // Predicated region
      $region61: #{run.5} parent=5 // pred_check
        %p782 = pneg %p781
      $region62: #{run.5} parent=5 // pred_check_branch
        %784 = sbr.rel (%p782) target = $region64
      $region63: #{run.5} parent=5 // pred_region
        %s785 = ssub.s32 %s28, 2
        // Predicated region
        $region65: #{run.5} parent=63 // pred_check
          %p786 = pneg %p232
        $region66: #{run.5} parent=63 // pred_check_branch
          %788 = sbr.rel (%p786) target = $region68
        $region67: #{run.5} parent=63 // pred_region
          %s789 = sand.u32 %s217, 1
          %s790 = scalar_lea.sflag [#allocation8], %s789
          %s791 = sand.u32 %s217, 1
          %s792 = smul.addr %s791, 8
          %s793 = scalar_lea.vmem [#allocation9], %s792
          %794 = dma.done %s790, 128
        $region68: #{run.5} parent=63 // pred_fallthru
          _
      $region64: #{run.5} parent=5 // pred_fallthru
        _
    $region6: #{run.5} parent=1 // loop_footer
      %s32 = sadd.s32 1, %s28
    $region7: #{run.5} parent=1 // loop_footer_branch
      %27 = sbr.rel target = $region3
    $region8: #{run.5} parent=1 // loop_exit
      _
    %795 = vsyncpa [#allocation7], 1
    %s796 = scalar_lea.sflag [#allocation7], 1
    %797 = vsyncpa %s796, 1
    %798 = vsyncpa [#allocation8], 1
    %s799 = scalar_lea.sflag [#allocation8], 1
    %800 = vsyncpa %s799, 1

</llo_original>
